<compile_context>
chip_gen: v6e
topology: v6e:2x2x1
jax: 0.10.0
libtpu: 0.0.40
codegen_flags: <defaults>
</compile_context>

<pallas_src>
import functools

import jax
import jax.numpy as jnp
from jax.experimental import pallas as pl
from jax.experimental.pallas import tpu as pltpu

EPS = 1e-5


def _bn_relu(z, gamma, beta):
    """BatchNorm1d (training-mode batch stats, biased var) + ReLU, folded
    to one scale/shift.  One-pass variance: E[z^2] - mu^2."""
    mu = jnp.mean(z, axis=0, keepdims=True)
    ex2 = jnp.mean(z * z, axis=0, keepdims=True)
    var = jnp.maximum(ex2 - mu * mu, 0.0)
    scale = gamma * jax.lax.rsqrt(var + EPS)
    shift = beta - mu * scale
    return jnp.maximum(z * scale + shift, 0.0)


def _graphconv_bn_relu(adj_bf, h, wcat_bf, gamma, beta):
    """GraphConv + BN + ReLU with the two matmuls fused (lane-aligned concat).

    adj_bf:  (N, N)   bf16 weighted adjacency, adj[dst, src] = sum(edge_weight)
    h:       (N, F)   f32 node features (F multiple of 128 here)
    wcat_bf: (2F, Fo) bf16, rows [0:F] = Wrel^T, rows [F:2F] = Wroot^T
    """
    h_bf = h.astype(jnp.bfloat16)
    agg = jnp.dot(adj_bf, h_bf, preferred_element_type=jnp.float32)
    cat = jnp.concatenate([agg.astype(jnp.bfloat16), h_bf], axis=1)
    z = jnp.dot(cat, wcat_bf, preferred_element_type=jnp.float32)
    return _bn_relu(z, gamma, beta)


def gnn_kernel(dst_ref, src_ref, ew_ref, x_ref,
               w1r_ref, w1s_ref, g1_ref, be1_ref,
               w2_ref, g2_ref, be2_ref,
               w3_ref, g3_ref, be3_ref,
               wl_ref, bl_ref,
               out_ref):
    n = x_ref.shape[0]
    e = src_ref.shape[1]

    # ---- build weighted adjacency in-kernel (no XLA scatter) --------------
    # d_mat[i, e] = w_e if dst_e == i else 0         (N, E)
    # s_mat[j, e] = 1   if src_e == j else 0         (N, E)
    # adj[i, j]   = sum_e d_mat[i,e] * s_mat[j,e]  -> sum over edges j->i of w_e
    # bf16 operands (one MXU pass), f32 accumulation; duplicate edges sum,
    # matching PyG 'add' aggregation.
    iota = jax.lax.broadcasted_iota(jnp.int32, (n, e), 0)
    d_mat = jnp.where(iota == dst_ref[...], ew_ref[...], 0.0).astype(jnp.bfloat16)
    s_mat = (iota == src_ref[...]).astype(jnp.bfloat16)
    adj_bf = jax.lax.dot_general(
        d_mat, s_mat,
        dimension_numbers=(((1,), (1,)), ((), ())),
        preferred_element_type=jnp.float32).astype(jnp.bfloat16)

    # ---- layer 1: split matmuls (K=528 is not 128-aligned; avoid the
    # misaligned concatenate), bf16 x comes straight from the wrapper -------
    x_bf = x_ref[...]
    agg1 = jnp.dot(adj_bf, x_bf, preferred_element_type=jnp.float32)
    z1 = (jnp.dot(agg1.astype(jnp.bfloat16), w1r_ref[...],
                  preferred_element_type=jnp.float32)
          + jnp.dot(x_bf, w1s_ref[...], preferred_element_type=jnp.float32))
    h = _bn_relu(z1, g1_ref[...], be1_ref[...])

    # ---- layers 2 & 3: fused (lane-aligned) GraphConv + BN + ReLU ---------
    h = _graphconv_bn_relu(adj_bf, h, w2_ref[...], g2_ref[...], be2_ref[...])
    h = _graphconv_bn_relu(adj_bf, h, w3_ref[...], g3_ref[...], be3_ref[...])

    # ---- lane-dense tail: everything below lives as a (1, N) row ----------
    z = jax.lax.dot_general(
        wl_ref[...], h,
        dimension_numbers=(((1,), (1,)), ((), ())),
        preferred_element_type=jnp.float32) + bl_ref[...]

    # stable log-sigmoid: min(z, 0) - log1p(exp(-|z|))
    ls = jnp.minimum(z, 0.0) - jnp.log1p(jnp.exp(-jnp.abs(z)))

    # logsumexp over the node (lane) axis, then subtract
    m = jnp.max(ls, axis=-1, keepdims=True)
    lse = m + jnp.log(jnp.sum(jnp.exp(ls - m), axis=-1, keepdims=True))
    out_ref[...] = ls - lse


def gnn_sample_forward_batched(x, edge_index, edge_weight, kparams):
    """Batched forward.

    x:           (B, N, 517) f32
    edge_index:  (B, 2, E)   int
    edge_weight: (B, E)      f32
    returns      (B, N, 1)   f32   (per-graph, identical to running the module
                                    independently on each graph)
    """
    b, n, f_in = x.shape
    e = edge_weight.shape[-1]
    f_pad = kparams["w1r"].shape[0]

    # pre-pad and pre-cast x to bf16 (halves the x DMA, no in-kernel cast)
    x_p = jnp.pad(x, ((0, 0), (0, 0), (0, f_pad - f_in))).astype(jnp.bfloat16)
    src = edge_index[:, 0, :].astype(jnp.int32).reshape(b, 1, e)  # message source
    dst = edge_index[:, 1, :].astype(jnp.int32).reshape(b, 1, e)  # message target
    ew = edge_weight.astype(jnp.float32).reshape(b, 1, e)

    weights = (kparams["w1r"], kparams["w1s"], kparams["g1"], kparams["be1"],
               kparams["w2"], kparams["g2"], kparams["be2"],
               kparams["w3"], kparams["g3"], kparams["be3"],
               kparams["wl_t"], kparams["bl"])

    # per-graph blocks (leading batch dim squeezed out of the kernel view)
    edge_spec = pl.BlockSpec((None, 1, e), lambda i: (i, 0, 0))
    x_spec = pl.BlockSpec((None, n, f_pad), lambda i: (i, 0, 0))
    out_spec = pl.BlockSpec((None, 1, n), lambda i: (i, 0, 0))
    # weights: constant block index across the grid -> DMA'd once, VMEM-resident
    w_spec = lambda a: pl.BlockSpec(a.shape, lambda i: (0, 0))

    out_rows = pl.pallas_call(
        gnn_kernel,
        out_shape=jax.ShapeDtypeStruct((b, 1, n), jnp.float32),
        grid=(b,),
        in_specs=[edge_spec, edge_spec, edge_spec, x_spec]
                 + [w_spec(w) for w in weights],
        out_specs=out_spec,
        compiler_params=pltpu.CompilerParams(
            dimension_semantics=("parallel",),   # shard graphs across TCs (v7x)
            vmem_limit_bytes=32 * 1024 * 1024),
    )(dst, src, ew, x_p, *weights)

    # (B, 1, N) lane-dense kernel output -> module's (B, N, 1)
    return out_rows.reshape(b, n, 1)


def gnn_sample_forward(x, edge_index, edge_weight, kparams):
    """Single-graph forward matching the PyTorch module signature.
    x: (N, 517) f32; edge_index: (2, E) int; edge_weight: (E,) f32 -> (N, 1)."""
    out = gnn_sample_forward_batched(x[None], edge_index[None],
                                     edge_weight[None], kparams)
    return out[0]


def init_params(key):
    """Raw module-style parameters (PyTorch default uniform init)."""
    dims = [(517, 256), (256, 128), (128, 64)]
    params = {}
    keys = jax.random.split(key, 16)
    k_it = iter(keys)

    for li, (fin, fout) in enumerate(dims, start=1):
        scale = 1.0 / jnp.sqrt(jnp.float32(fin))
        # stored transposed (fin, fout) so kernel does x @ W
        params[f"w{li}r"] = jax.random.uniform(next(k_it), (fin, fout),
                                               jnp.float32, -scale, scale)
        params[f"w{li}s"] = jax.random.uniform(next(k_it), (fin, fout),
                                               jnp.float32, -scale, scale)
        # lin_rel bias exists in the module but is exactly cancelled by
        # training-mode BatchNorm mean subtraction, so it is not materialized.
        params[f"g{li}"] = jnp.ones((1, fout), jnp.float32)    # BN weight
        params[f"be{li}"] = jnp.zeros((1, fout), jnp.float32)  # BN bias

    scale = 1.0 / jnp.sqrt(jnp.float32(64))
    params["wl"] = jax.random.uniform(next(k_it), (64, 1), jnp.float32, -scale, scale)
    params["bl"] = jax.random.uniform(next(k_it), (1, 1), jnp.float32, -scale, scale)
    return params


def prepare_kernel_params(params, f_in=517):
    """Fuse / pad / cast parameters into the kernel-ready layout.
    NOTE: x-column padding and w1-row padding must stay tied together."""
    f_pad = ((f_in + 15) // 16) * 16  # 517 -> 528 (bf16 sublane packing = 16)
    pad_rows = lambda w: jnp.pad(w, ((0, f_pad - f_in), (0, 0)))
    return {
        # layer 1 kept split (K=528 is not 128-aligned)
        "w1r": pad_rows(params["w1r"]).astype(jnp.bfloat16),   # lin_rel^T
        "w1s": pad_rows(params["w1s"]).astype(jnp.bfloat16),   # lin_root^T
        # layers 2/3 fused [Wrel^T; Wroot^T] blocks, streamed as bf16
        "w2": jnp.concatenate([params["w2r"], params["w2s"]],
                              axis=0).astype(jnp.bfloat16),
        "w3": jnp.concatenate([params["w3r"], params["w3s"]],
                              axis=0).astype(jnp.bfloat16),
        "g1": params["g1"], "be1": params["be1"],
        "g2": params["g2"], "be2": params["be2"],
        "g3": params["g3"], "be3": params["be3"],
        "wl_t": params["wl"].T,   # (1, 64)
        "bl": params["bl"],       # (1, 1)
    }


if __name__ == "__main__":
    key = jax.random.PRNGKey(0)
    k_x, k_ei, k_ew, k_p = jax.random.split(key, 4)

    B, N, E, F_IN = 8, 16, 48, 517
    x = jax.random.normal(k_x, (B, N, F_IN), jnp.float32)
    edge_index = jax.random.randint(k_ei, (B, 2, E), 0, N, jnp.int32)
    edge_weight = jax.random.uniform(k_ew, (B, E), jnp.float32)

    params = init_params(k_p)
    kparams = prepare_kernel_params(params, f_in=F_IN)

    # batched path (weights VMEM-resident across the graph grid)
    fwd_b = jax.jit(functools.partial(gnn_sample_forward_batched, kparams=kparams))
    out_b = fwd_b(x, edge_index, edge_weight)
    jax.block_until_ready(out_b)
    assert out_b.shape == (B, N, 1) and out_b.dtype == jnp.float32
    assert bool(jnp.all(jnp.isfinite(out_b)))

    # single-graph path (original module signature)
    fwd_1 = jax.jit(functools.partial(gnn_sample_forward, kparams=kparams))
    out_1 = fwd_1(x[0], edge_index[0], edge_weight[0])
    jax.block_until_ready(out_1)
    assert out_1.shape == (N, 1) and out_1.dtype == jnp.float32

    print("KERNEL_OK")
</pallas_src>

<mosaic_0001>
module attributes {stable_mosaic.version = 11 : i64} {
  func.func @gnn_kernel(%arg0: i32, %arg1: memref<1x1x48xi32, #tpu.memory_space<vmem>>, %arg2: memref<1x1x48xi32, #tpu.memory_space<vmem>>, %arg3: memref<1x1x48xf32, #tpu.memory_space<vmem>>, %arg4: memref<1x16x528xbf16, #tpu.memory_space<vmem>>, %arg5: memref<528x256xbf16, #tpu.memory_space<vmem>>, %arg6: memref<528x256xbf16, #tpu.memory_space<vmem>>, %arg7: memref<1x256xf32, #tpu.memory_space<vmem>>, %arg8: memref<1x256xf32, #tpu.memory_space<vmem>>, %arg9: memref<512x128xbf16, #tpu.memory_space<vmem>>, %arg10: memref<1x128xf32, #tpu.memory_space<vmem>>, %arg11: memref<1x128xf32, #tpu.memory_space<vmem>>, %arg12: memref<256x64xbf16, #tpu.memory_space<vmem>>, %arg13: memref<1x64xf32, #tpu.memory_space<vmem>>, %arg14: memref<1x64xf32, #tpu.memory_space<vmem>>, %arg15: memref<1x64xf32, #tpu.memory_space<vmem>>, %arg16: memref<1x1xf32, #tpu.memory_space<vmem>>, %arg17: memref<1x1x16xf32, #tpu.memory_space<vmem>>) attributes {dimension_semantics = [#tpu.dimension_semantics<parallel>], iteration_bounds = array<i64: 8>, scalar_prefetch = 0 : i64, scratch_operands = 0 : i64, tpu.core_type = #tpu.core_type<tc>, window_params = [{transform_indices = @transform_0, window_bounds = array<i64: 1, 1, 48>}, {transform_indices = @transform_1, window_bounds = array<i64: 1, 1, 48>}, {transform_indices = @transform_2, window_bounds = array<i64: 1, 1, 48>}, {transform_indices = @transform_3, window_bounds = array<i64: 1, 16, 528>}, {pipeline_mode = #tpu.pipeline_mode<synchronous>, transform_indices = @transform_4, window_bounds = array<i64: 528, 256>}, {pipeline_mode = #tpu.pipeline_mode<synchronous>, transform_indices = @transform_5, window_bounds = array<i64: 528, 256>}, {pipeline_mode = #tpu.pipeline_mode<synchronous>, transform_indices = @transform_6, window_bounds = array<i64: 1, 256>}, {pipeline_mode = #tpu.pipeline_mode<synchronous>, transform_indices = @transform_7, window_bounds = array<i64: 1, 256>}, {pipeline_mode = #tpu.pipeline_mode<synchronous>, transform_indices = @transform_8, window_bounds = array<i64: 512, 128>}, {pipeline_mode = #tpu.pipeline_mode<synchronous>, transform_indices = @transform_9, window_bounds = array<i64: 1, 128>}, {pipeline_mode = #tpu.pipeline_mode<synchronous>, transform_indices = @transform_10, window_bounds = array<i64: 1, 128>}, {pipeline_mode = #tpu.pipeline_mode<synchronous>, transform_indices = @transform_11, window_bounds = array<i64: 256, 64>}, {pipeline_mode = #tpu.pipeline_mode<synchronous>, transform_indices = @transform_12, window_bounds = array<i64: 1, 64>}, {pipeline_mode = #tpu.pipeline_mode<synchronous>, transform_indices = @transform_13, window_bounds = array<i64: 1, 64>}, {pipeline_mode = #tpu.pipeline_mode<synchronous>, transform_indices = @transform_14, window_bounds = array<i64: 1, 64>}, {pipeline_mode = #tpu.pipeline_mode<synchronous>, transform_indices = @transform_15, window_bounds = array<i64: 1, 1>}, {transform_indices = @transform_16, window_bounds = array<i64: 1, 1, 16>}]} {
    %0 = tpu.iota {dimensions = array<i32: 0>} : vector<16x48xi32>
    %c0 = arith.constant 0 : index
    %c0_0 = arith.constant 0 : index
    %c0_1 = arith.constant 0 : index
    %1 = vector.load %arg1[%c0, %c0_0, %c0_1] : memref<1x1x48xi32, #tpu.memory_space<vmem>>, vector<1x1x48xi32>
    %2 = vector.shape_cast %1 : vector<1x1x48xi32> to vector<1x48xi32>
    %3 = vector.broadcast %2 : vector<1x48xi32> to vector<16x48xi32>
    %4 = arith.cmpi eq, %0, %3 : vector<16x48xi32>
    %c0_2 = arith.constant 0 : index
    %c0_3 = arith.constant 0 : index
    %c0_4 = arith.constant 0 : index
    %5 = vector.load %arg3[%c0_2, %c0_3, %c0_4] : memref<1x1x48xf32, #tpu.memory_space<vmem>>, vector<1x1x48xf32>
    %6 = vector.shape_cast %5 : vector<1x1x48xf32> to vector<1x48xf32>
    %cst = arith.constant 0.000000e+00 : f32
    %7 = vector.shape_cast %6 : vector<1x48xf32> to vector<1x48xf32>
    %8 = vector.broadcast %7 : vector<1x48xf32> to vector<16x48xf32>
    %9 = vector.broadcast %cst : f32 to vector<16x48xf32>
    %10 = arith.select %4, %8, %9 : vector<16x48xi1>, vector<16x48xf32>
    %11 = arith.truncf %10 : vector<16x48xf32> to vector<16x48xbf16>
    %c0_5 = arith.constant 0 : index
    %c0_6 = arith.constant 0 : index
    %c0_7 = arith.constant 0 : index
    %12 = vector.load %arg2[%c0_5, %c0_6, %c0_7] : memref<1x1x48xi32, #tpu.memory_space<vmem>>, vector<1x1x48xi32>
    %13 = vector.shape_cast %12 : vector<1x1x48xi32> to vector<1x48xi32>
    %14 = vector.broadcast %13 : vector<1x48xi32> to vector<16x48xi32>
    %15 = arith.cmpi eq, %0, %14 : vector<16x48xi32>
    %16 = arith.extui %15 : vector<16x48xi1> to vector<16x48xi32>
    %17 = arith.sitofp %16 : vector<16x48xi32> to vector<16x48xf32>
    %18 = arith.truncf %17 : vector<16x48xf32> to vector<16x48xbf16>
    %cst_8 = arith.constant dense<0.000000e+00> : vector<16x16xf32>
    %19 = tpu.matmul %11, %18, %cst_8 {dimension_numbers = #tpu.dot_dimension_numbers<[1], [1], [0], [0], [0, 0, 1, 0], [], []>} : vector<16x48xbf16>, vector<16x48xbf16>, vector<16x16xf32> -> vector<16x16xf32>
    %20 = arith.truncf %19 : vector<16x16xf32> to vector<16x16xbf16>
    %c0_9 = arith.constant 0 : index
    %c0_10 = arith.constant 0 : index
    %c0_11 = arith.constant 0 : index
    %21 = vector.load %arg4[%c0_9, %c0_10, %c0_11] : memref<1x16x528xbf16, #tpu.memory_space<vmem>>, vector<1x16x528xbf16>
    %22 = vector.shape_cast %21 : vector<1x16x528xbf16> to vector<16x528xbf16>
    %cst_12 = arith.constant dense<0.000000e+00> : vector<16x528xf32>
    %23 = tpu.matmul %20, %22, %cst_12 {dimension_numbers = #tpu.dot_dimension_numbers<[1], [0], [0], [1], [0, 0, 1, 1], [], []>} : vector<16x16xbf16>, vector<16x528xbf16>, vector<16x528xf32> -> vector<16x528xf32>
    %24 = arith.truncf %23 : vector<16x528xf32> to vector<16x528xbf16>
    %c0_13 = arith.constant 0 : index
    %c0_14 = arith.constant 0 : index
    %25 = vector.load %arg5[%c0_13, %c0_14] : memref<528x256xbf16, #tpu.memory_space<vmem>>, vector<528x256xbf16>
    %cst_15 = arith.constant dense<0.000000e+00> : vector<16x256xf32>
    %26 = tpu.matmul %24, %25, %cst_15 {dimension_numbers = #tpu.dot_dimension_numbers<[1], [0], [0], [1], [0, 0, 1, 1], [], []>} : vector<16x528xbf16>, vector<528x256xbf16>, vector<16x256xf32> -> vector<16x256xf32>
    %c0_16 = arith.constant 0 : index
    %c0_17 = arith.constant 0 : index
    %27 = vector.load %arg6[%c0_16, %c0_17] : memref<528x256xbf16, #tpu.memory_space<vmem>>, vector<528x256xbf16>
    %cst_18 = arith.constant dense<0.000000e+00> : vector<16x256xf32>
    %28 = tpu.matmul %22, %27, %cst_18 {dimension_numbers = #tpu.dot_dimension_numbers<[1], [0], [0], [1], [0, 0, 1, 1], [], []>} : vector<16x528xbf16>, vector<528x256xbf16>, vector<16x256xf32> -> vector<16x256xf32>
    %29 = arith.addf %26, %28 : vector<16x256xf32>
    %c0_19 = arith.constant 0 : index
    %c0_20 = arith.constant 0 : index
    %30 = vector.load %arg7[%c0_19, %c0_20] : memref<1x256xf32, #tpu.memory_space<vmem>>, vector<1x256xf32>
    %c0_21 = arith.constant 0 : index
    %c0_22 = arith.constant 0 : index
    %31 = vector.load %arg8[%c0_21, %c0_22] : memref<1x256xf32, #tpu.memory_space<vmem>>, vector<1x256xf32>
    %cst_23 = arith.constant dense<0.000000e+00> : vector<256xf32>
    %32 = vector.multi_reduction <add>, %29, %cst_23 [0] : vector<16x256xf32> to vector<256xf32>
    %33 = vector.shape_cast %32 : vector<256xf32> to vector<1x256xf32>
    %cst_24 = arith.constant 1.600000e+01 : f32
    %34 = vector.broadcast %cst_24 : f32 to vector<1x256xf32>
    %35 = arith.divf %33, %34 : vector<1x256xf32>
    %36 = arith.mulf %29, %29 : vector<16x256xf32>
    %cst_25 = arith.constant dense<0.000000e+00> : vector<256xf32>
    %37 = vector.multi_reduction <add>, %36, %cst_25 [0] : vector<16x256xf32> to vector<256xf32>
    %38 = vector.shape_cast %37 : vector<256xf32> to vector<1x256xf32>
    %cst_26 = arith.constant 1.600000e+01 : f32
    %39 = vector.broadcast %cst_26 : f32 to vector<1x256xf32>
    %40 = arith.divf %38, %39 : vector<1x256xf32>
    %41 = arith.mulf %35, %35 : vector<1x256xf32>
    %42 = arith.subf %40, %41 : vector<1x256xf32>
    %cst_27 = arith.constant 0.000000e+00 : f32
    %43 = vector.broadcast %cst_27 : f32 to vector<1x256xf32>
    %44 = arith.maximumf %42, %43 : vector<1x256xf32>
    %cst_28 = arith.constant 9.99999974E-6 : f32
    %45 = vector.broadcast %cst_28 : f32 to vector<1x256xf32>
    %46 = arith.addf %44, %45 : vector<1x256xf32>
    %47 = math.rsqrt %46 : vector<1x256xf32>
    %48 = arith.mulf %30, %47 : vector<1x256xf32>
    %49 = arith.mulf %35, %48 : vector<1x256xf32>
    %50 = arith.subf %31, %49 : vector<1x256xf32>
    %51 = vector.broadcast %48 : vector<1x256xf32> to vector<16x256xf32>
    %52 = arith.mulf %29, %51 : vector<16x256xf32>
    %53 = vector.broadcast %50 : vector<1x256xf32> to vector<16x256xf32>
    %54 = arith.addf %52, %53 : vector<16x256xf32>
    %cst_29 = arith.constant 0.000000e+00 : f32
    %55 = vector.broadcast %cst_29 : f32 to vector<16x256xf32>
    %56 = arith.maximumf %54, %55 : vector<16x256xf32>
    %c0_30 = arith.constant 0 : index
    %c0_31 = arith.constant 0 : index
    %57 = vector.load %arg9[%c0_30, %c0_31] : memref<512x128xbf16, #tpu.memory_space<vmem>>, vector<512x128xbf16>
    %c0_32 = arith.constant 0 : index
    %c0_33 = arith.constant 0 : index
    %58 = vector.load %arg10[%c0_32, %c0_33] : memref<1x128xf32, #tpu.memory_space<vmem>>, vector<1x128xf32>
    %c0_34 = arith.constant 0 : index
    %c0_35 = arith.constant 0 : index
    %59 = vector.load %arg11[%c0_34, %c0_35] : memref<1x128xf32, #tpu.memory_space<vmem>>, vector<1x128xf32>
    %60 = arith.truncf %56 : vector<16x256xf32> to vector<16x256xbf16>
    %cst_36 = arith.constant dense<0.000000e+00> : vector<16x256xf32>
    %61 = tpu.matmul %20, %60, %cst_36 {dimension_numbers = #tpu.dot_dimension_numbers<[1], [0], [0], [1], [0, 0, 1, 1], [], []>} : vector<16x16xbf16>, vector<16x256xbf16>, vector<16x256xf32> -> vector<16x256xf32>
    %62 = arith.truncf %61 : vector<16x256xf32> to vector<16x256xbf16>
    %63 = tpu.concatenate %62, %60 in 1 : vector<16x256xbf16>, vector<16x256xbf16> -> vector<16x512xbf16>
    %cst_37 = arith.constant dense<0.000000e+00> : vector<16x128xf32>
    %64 = tpu.matmul %63, %57, %cst_37 {dimension_numbers = #tpu.dot_dimension_numbers<[1], [0], [0], [1], [0, 0, 1, 1], [], []>} : vector<16x512xbf16>, vector<512x128xbf16>, vector<16x128xf32> -> vector<16x128xf32>
    %cst_38 = arith.constant dense<0.000000e+00> : vector<128xf32>
    %65 = vector.multi_reduction <add>, %64, %cst_38 [0] : vector<16x128xf32> to vector<128xf32>
    %66 = vector.shape_cast %65 : vector<128xf32> to vector<1x128xf32>
    %cst_39 = arith.constant 1.600000e+01 : f32
    %67 = vector.broadcast %cst_39 : f32 to vector<1x128xf32>
    %68 = arith.divf %66, %67 : vector<1x128xf32>
    %69 = arith.mulf %64, %64 : vector<16x128xf32>
    %cst_40 = arith.constant dense<0.000000e+00> : vector<128xf32>
    %70 = vector.multi_reduction <add>, %69, %cst_40 [0] : vector<16x128xf32> to vector<128xf32>
    %71 = vector.shape_cast %70 : vector<128xf32> to vector<1x128xf32>
    %cst_41 = arith.constant 1.600000e+01 : f32
    %72 = vector.broadcast %cst_41 : f32 to vector<1x128xf32>
    %73 = arith.divf %71, %72 : vector<1x128xf32>
    %74 = arith.mulf %68, %68 : vector<1x128xf32>
    %75 = arith.subf %73, %74 : vector<1x128xf32>
    %cst_42 = arith.constant 0.000000e+00 : f32
    %76 = vector.broadcast %cst_42 : f32 to vector<1x128xf32>
    %77 = arith.maximumf %75, %76 : vector<1x128xf32>
    %cst_43 = arith.constant 9.99999974E-6 : f32
    %78 = vector.broadcast %cst_43 : f32 to vector<1x128xf32>
    %79 = arith.addf %77, %78 : vector<1x128xf32>
    %80 = math.rsqrt %79 : vector<1x128xf32>
    %81 = arith.mulf %58, %80 : vector<1x128xf32>
    %82 = arith.mulf %68, %81 : vector<1x128xf32>
    %83 = arith.subf %59, %82 : vector<1x128xf32>
    %84 = vector.broadcast %81 : vector<1x128xf32> to vector<16x128xf32>
    %85 = arith.mulf %64, %84 : vector<16x128xf32>
    %86 = vector.broadcast %83 : vector<1x128xf32> to vector<16x128xf32>
    %87 = arith.addf %85, %86 : vector<16x128xf32>
    %cst_44 = arith.constant 0.000000e+00 : f32
    %88 = vector.broadcast %cst_44 : f32 to vector<16x128xf32>
    %89 = arith.maximumf %87, %88 : vector<16x128xf32>
    %c0_45 = arith.constant 0 : index
    %c0_46 = arith.constant 0 : index
    %90 = vector.load %arg12[%c0_45, %c0_46] : memref<256x64xbf16, #tpu.memory_space<vmem>>, vector<256x64xbf16>
    %c0_47 = arith.constant 0 : index
    %c0_48 = arith.constant 0 : index
    %91 = vector.load %arg13[%c0_47, %c0_48] : memref<1x64xf32, #tpu.memory_space<vmem>>, vector<1x64xf32>
    %c0_49 = arith.constant 0 : index
    %c0_50 = arith.constant 0 : index
    %92 = vector.load %arg14[%c0_49, %c0_50] : memref<1x64xf32, #tpu.memory_space<vmem>>, vector<1x64xf32>
    %93 = arith.truncf %89 : vector<16x128xf32> to vector<16x128xbf16>
    %cst_51 = arith.constant dense<0.000000e+00> : vector<16x128xf32>
    %94 = tpu.matmul %20, %93, %cst_51 {dimension_numbers = #tpu.dot_dimension_numbers<[1], [0], [0], [1], [0, 0, 1, 1], [], []>} : vector<16x16xbf16>, vector<16x128xbf16>, vector<16x128xf32> -> vector<16x128xf32>
    %95 = arith.truncf %94 : vector<16x128xf32> to vector<16x128xbf16>
    %96 = tpu.concatenate %95, %93 in 1 : vector<16x128xbf16>, vector<16x128xbf16> -> vector<16x256xbf16>
    %cst_52 = arith.constant dense<0.000000e+00> : vector<16x64xf32>
    %97 = tpu.matmul %96, %90, %cst_52 {dimension_numbers = #tpu.dot_dimension_numbers<[1], [0], [0], [1], [0, 0, 1, 1], [], []>} : vector<16x256xbf16>, vector<256x64xbf16>, vector<16x64xf32> -> vector<16x64xf32>
    %cst_53 = arith.constant dense<0.000000e+00> : vector<64xf32>
    %98 = vector.multi_reduction <add>, %97, %cst_53 [0] : vector<16x64xf32> to vector<64xf32>
    %99 = vector.shape_cast %98 : vector<64xf32> to vector<1x64xf32>
    %cst_54 = arith.constant 1.600000e+01 : f32
    %100 = vector.broadcast %cst_54 : f32 to vector<1x64xf32>
    %101 = arith.divf %99, %100 : vector<1x64xf32>
    %102 = arith.mulf %97, %97 : vector<16x64xf32>
    %cst_55 = arith.constant dense<0.000000e+00> : vector<64xf32>
    %103 = vector.multi_reduction <add>, %102, %cst_55 [0] : vector<16x64xf32> to vector<64xf32>
    %104 = vector.shape_cast %103 : vector<64xf32> to vector<1x64xf32>
    %cst_56 = arith.constant 1.600000e+01 : f32
    %105 = vector.broadcast %cst_56 : f32 to vector<1x64xf32>
    %106 = arith.divf %104, %105 : vector<1x64xf32>
    %107 = arith.mulf %101, %101 : vector<1x64xf32>
    %108 = arith.subf %106, %107 : vector<1x64xf32>
    %cst_57 = arith.constant 0.000000e+00 : f32
    %109 = vector.broadcast %cst_57 : f32 to vector<1x64xf32>
    %110 = arith.maximumf %108, %109 : vector<1x64xf32>
    %cst_58 = arith.constant 9.99999974E-6 : f32
    %111 = vector.broadcast %cst_58 : f32 to vector<1x64xf32>
    %112 = arith.addf %110, %111 : vector<1x64xf32>
    %113 = math.rsqrt %112 : vector<1x64xf32>
    %114 = arith.mulf %91, %113 : vector<1x64xf32>
    %115 = arith.mulf %101, %114 : vector<1x64xf32>
    %116 = arith.subf %92, %115 : vector<1x64xf32>
    %117 = vector.broadcast %114 : vector<1x64xf32> to vector<16x64xf32>
    %118 = arith.mulf %97, %117 : vector<16x64xf32>
    %119 = vector.broadcast %116 : vector<1x64xf32> to vector<16x64xf32>
    %120 = arith.addf %118, %119 : vector<16x64xf32>
    %cst_59 = arith.constant 0.000000e+00 : f32
    %121 = vector.broadcast %cst_59 : f32 to vector<16x64xf32>
    %122 = arith.maximumf %120, %121 : vector<16x64xf32>
    %c0_60 = arith.constant 0 : index
    %c0_61 = arith.constant 0 : index
    %123 = vector.load %arg15[%c0_60, %c0_61] : memref<1x64xf32, #tpu.memory_space<vmem>>, vector<1x64xf32>
    %cst_62 = arith.constant dense<0.000000e+00> : vector<1x16xf32>
    %124 = tpu.matmul %123, %122, %cst_62 {dimension_numbers = #tpu.dot_dimension_numbers<[1], [1], [0], [0], [0, 0, 1, 0], [], []>} : vector<1x64xf32>, vector<16x64xf32>, vector<1x16xf32> -> vector<1x16xf32>
    %c0_63 = arith.constant 0 : index
    %c0_64 = arith.constant 0 : index
    %125 = vector.load %arg16[%c0_63, %c0_64] : memref<1x1xf32, #tpu.memory_space<vmem>>, vector<1x1xf32>
    %126 = vector.broadcast %125 : vector<1x1xf32> to vector<1x16xf32>
    %127 = arith.addf %124, %126 : vector<1x16xf32>
    %cst_65 = arith.constant 0.000000e+00 : f32
    %128 = vector.broadcast %cst_65 : f32 to vector<1x16xf32>
    %129 = arith.minimumf %127, %128 : vector<1x16xf32>
    %130 = math.absf %127 : vector<1x16xf32>
    %cst_66 = arith.constant 0.000000e+00 : f32
    %131 = vector.broadcast %cst_66 : f32 to vector<1x16xf32>
    %132 = arith.subf %131, %130 : vector<1x16xf32>
    %133 = math.exp %132 : vector<1x16xf32>
    %134 = math.log1p %133 : vector<1x16xf32>
    %135 = arith.subf %129, %134 : vector<1x16xf32>
    %cst_67 = arith.constant dense<0xFF800000> : vector<1xf32>
    %136 = vector.multi_reduction <maximumf>, %135, %cst_67 [1] : vector<1x16xf32> to vector<1xf32>
    %137 = vector.shape_cast %136 : vector<1xf32> to vector<1x1xf32>
    %138 = vector.broadcast %137 : vector<1x1xf32> to vector<1x16xf32>
    %139 = arith.subf %135, %138 : vector<1x16xf32>
    %140 = math.exp %139 : vector<1x16xf32>
    %cst_68 = arith.constant dense<0.000000e+00> : vector<1xf32>
    %141 = vector.multi_reduction <add>, %140, %cst_68 [1] : vector<1x16xf32> to vector<1xf32>
    %142 = vector.shape_cast %141 : vector<1xf32> to vector<1x1xf32>
    %143 = math.log %142 : vector<1x1xf32>
    %144 = arith.addf %137, %143 : vector<1x1xf32>
    %145 = vector.broadcast %144 : vector<1x1xf32> to vector<1x16xf32>
    %146 = arith.subf %135, %145 : vector<1x16xf32>
    %c0_69 = arith.constant 0 : index
    %c0_70 = arith.constant 0 : index
    %c0_71 = arith.constant 0 : index
    %147 = vector.load %arg17[%c0_69, %c0_70, %c0_71] : memref<1x1x16xf32, #tpu.memory_space<vmem>>, vector<1x1x16xf32>
    %148 = vector.shape_cast %147 : vector<1x1x16xf32> to vector<1x16xf32>
    %149 = vector.shape_cast %146 : vector<1x16xf32> to vector<1x1x16xf32>
    tpu.vector_store %arg17[%c0_69, %c0_70, %c0_71], %149 {strides = array<i32>} : memref<1x1x16xf32, #tpu.memory_space<vmem>>, vector<1x1x16xf32>,
    return
  }
  func.func @transform_0(%arg0: i32) -> (i32, i32, i32) {
    %c0_i32 = arith.constant 0 : i32
    %c0_i32_0 = arith.constant 0 : i32
    %c0_i32_1 = arith.constant 0 : i32
    return %arg0, %c0_i32, %c0_i32_0 : i32, i32, i32
  }
  func.func @transform_1(%arg0: i32) -> (i32, i32, i32) {
    %c0_i32 = arith.constant 0 : i32
    %c0_i32_0 = arith.constant 0 : i32
    %c0_i32_1 = arith.constant 0 : i32
    return %arg0, %c0_i32, %c0_i32_0 : i32, i32, i32
  }
  func.func @transform_2(%arg0: i32) -> (i32, i32, i32) {
    %c0_i32 = arith.constant 0 : i32
    %c0_i32_0 = arith.constant 0 : i32
    %c0_i32_1 = arith.constant 0 : i32
    return %arg0, %c0_i32, %c0_i32_0 : i32, i32, i32
  }
  func.func @transform_3(%arg0: i32) -> (i32, i32, i32) {
    %c0_i32 = arith.constant 0 : i32
    %c0_i32_0 = arith.constant 0 : i32
    %c0_i32_1 = arith.constant 0 : i32
    return %arg0, %c0_i32, %c0_i32_0 : i32, i32, i32
  }
  func.func @transform_4(%arg0: i32) -> (i32, i32) {
    %c0_i32 = arith.constant 0 : i32
    %c0_i32_0 = arith.constant 0 : i32
    %c0_i32_1 = arith.constant 0 : i32
    return %c0_i32, %c0_i32_0 : i32, i32
  }
  func.func @transform_5(%arg0: i32) -> (i32, i32) {
    %c0_i32 = arith.constant 0 : i32
    %c0_i32_0 = arith.constant 0 : i32
    %c0_i32_1 = arith.constant 0 : i32
    return %c0_i32, %c0_i32_0 : i32, i32
  }
  func.func @transform_6(%arg0: i32) -> (i32, i32) {
    %c0_i32 = arith.constant 0 : i32
    %c0_i32_0 = arith.constant 0 : i32
    %c0_i32_1 = arith.constant 0 : i32
    return %c0_i32, %c0_i32_0 : i32, i32
  }
  func.func @transform_7(%arg0: i32) -> (i32, i32) {
    %c0_i32 = arith.constant 0 : i32
    %c0_i32_0 = arith.constant 0 : i32
    %c0_i32_1 = arith.constant 0 : i32
    return %c0_i32, %c0_i32_0 : i32, i32
  }
  func.func @transform_8(%arg0: i32) -> (i32, i32) {
    %c0_i32 = arith.constant 0 : i32
    %c0_i32_0 = arith.constant 0 : i32
    %c0_i32_1 = arith.constant 0 : i32
    return %c0_i32, %c0_i32_0 : i32, i32
  }
  func.func @transform_9(%arg0: i32) -> (i32, i32) {
    %c0_i32 = arith.constant 0 : i32
    %c0_i32_0 = arith.constant 0 : i32
    %c0_i32_1 = arith.constant 0 : i32
    return %c0_i32, %c0_i32_0 : i32, i32
  }
  func.func @transform_10(%arg0: i32) -> (i32, i32) {
    %c0_i32 = arith.constant 0 : i32
    %c0_i32_0 = arith.constant 0 : i32
    %c0_i32_1 = arith.constant 0 : i32
    return %c0_i32, %c0_i32_0 : i32, i32
  }
  func.func @transform_11(%arg0: i32) -> (i32, i32) {
    %c0_i32 = arith.constant 0 : i32
    %c0_i32_0 = arith.constant 0 : i32
    %c0_i32_1 = arith.constant 0 : i32
    return %c0_i32, %c0_i32_0 : i32, i32
  }
  func.func @transform_12(%arg0: i32) -> (i32, i32) {
    %c0_i32 = arith.constant 0 : i32
    %c0_i32_0 = arith.constant 0 : i32
    %c0_i32_1 = arith.constant 0 : i32
    return %c0_i32, %c0_i32_0 : i32, i32
  }
  func.func @transform_13(%arg0: i32) -> (i32, i32) {
    %c0_i32 = arith.constant 0 : i32
    %c0_i32_0 = arith.constant 0 : i32
    %c0_i32_1 = arith.constant 0 : i32
    return %c0_i32, %c0_i32_0 : i32, i32
  }
  func.func @transform_14(%arg0: i32) -> (i32, i32) {
    %c0_i32 = arith.constant 0 : i32
    %c0_i32_0 = arith.constant 0 : i32
    %c0_i32_1 = arith.constant 0 : i32
    return %c0_i32, %c0_i32_0 : i32, i32
  }
  func.func @transform_15(%arg0: i32) -> (i32, i32) {
    %c0_i32 = arith.constant 0 : i32
    %c0_i32_0 = arith.constant 0 : i32
    %c0_i32_1 = arith.constant 0 : i32
    return %c0_i32, %c0_i32_0 : i32, i32
  }
  func.func @transform_16(%arg0: i32) -> (i32, i32, i32) {
    %c0_i32 = arith.constant 0 : i32
    %c0_i32_0 = arith.constant 0 : i32
    %c0_i32_1 = arith.constant 0 : i32
    return %arg0, %c0_i32, %c0_i32_0 : i32, i32, i32
  }
}

</mosaic_0001>

<llo_original>
// kernel: gnn_sample_forward_batched.1
$region0: #{gnn_sample_forward_batched.1}
  #allocation0 [shape = 'u32[]', space=smem, size = 0x4, offset = 0x4, fixed_abs, tag = 'smem constant byte address 0x4 - core index']
  #allocation1 [shape = 'u32[144,128]{1,0:T(1,128)}', space=vmem, size = 0x12000, scoped, tag = 'internal scratch']
  #allocation2 [shape = 'f32[1,1]{1,0:T(1,128)S(1)}', space=vmem, size = 0x200, scoped, tag = 'scoped memory for gnn_sample_forward_batched.1']
  %s0 = inlined_call_operand.vmem [shape: s32[8,1,48], index: 0, kind: input, shape index: {}]
  %s1 = inlined_call_operand.vmem [shape: s32[8,1,48], index: 1, kind: input, shape index: {}]
  %s2 = inlined_call_operand.vmem [shape: f32[8,1,48], index: 2, kind: input, shape index: {}]
  %s3 = inlined_call_operand.vmem [shape: bf16[8,16,528], index: 3, kind: input, shape index: {}]
  %s4 = inlined_call_operand.vmem [shape: bf16[528,256], index: 4, kind: input, shape index: {}]
  %s5 = inlined_call_operand.vmem [shape: bf16[528,256], index: 5, kind: input, shape index: {}]
  %s6 = inlined_call_operand.vmem [shape: f32[1,256], index: 6, kind: input, shape index: {}]
  %s7 = inlined_call_operand.vmem [shape: f32[1,256], index: 7, kind: input, shape index: {}]
  %s8 = inlined_call_operand.vmem [shape: bf16[512,128], index: 8, kind: input, shape index: {}]
  %s9 = inlined_call_operand.vmem [shape: f32[1,128], index: 9, kind: input, shape index: {}]
  %s10 = inlined_call_operand.vmem [shape: f32[1,128], index: 10, kind: input, shape index: {}]
  %s11 = inlined_call_operand.vmem [shape: bf16[256,64], index: 11, kind: input, shape index: {}]
  %s12 = inlined_call_operand.vmem [shape: f32[1,64], index: 12, kind: input, shape index: {}]
  %s13 = inlined_call_operand.vmem [shape: f32[1,64], index: 13, kind: input, shape index: {}]
  %s14 = inlined_call_operand.vmem [shape: f32[1,64], index: 14, kind: input, shape index: {}]
  %s15 = inlined_call_operand.<no memory space> [shape: f32[1,1], index: 15, kind: input, shape index: {}]
  %s16 = inlined_call_operand.hbm [shape: f32[8,1,16], index: 16, kind: output, shape index: {}]
  %s17 = sld [smem:[#allocation0]]
  $region97: #{gnn_sample_forward_batched.1} parent=0
    _
  %s19 = ssub.s32 1, %s17
  %s20 = scalar_select 0, %s19, %s17
  %v21 = vstv %s15
  %22 = vst [vmem:[#allocation2] sm:$0x1] %v21
  $region1: #{gnn_sample_forward_batched.1} parent=0
    #allocation3 [shape = 'u8[1024]{0}', space=vmem, size = 0x400, scoped, tag = 'output window, operand 0']
    #allocation4 [shape = 's32[2]{0}', space=sflag, size = 0x8, scoped, tag = 'scoped memory for gnn_sample_forward_batched.1']
    %23 = vsyncpa [#allocation4], 0
    %s24 = scalar_lea.sflag [#allocation4], 1
    %25 = vsyncpa %s24, 0
    loop: start=0, step=1, limit=10
    $region2: #{gnn_sample_forward_batched.1} parent=1 // loop_pre_header
      _
    $region3: #{gnn_sample_forward_batched.1} parent=1 // loop_header
      %s27 = sphi 0, %s31
      %p28 = scmp.ge.s32.totalorder %s27, 10
      %s37 = sphi 0, %s39
      %s40 = sphi 0, %s37
      %s41 = sphi 0, %s40
      %s57 = sphi 0, %s41
      %s63 = sphi 0, %s65
      %s66 = sphi 0, %s63
      %s67 = sphi 0, %s66
      %s83 = sphi 0, %s67
      %s89 = sphi 0, %s91
      %s92 = sphi 0, %s89
      %s93 = sphi 0, %s92
      %s109 = sphi 0, %s93
      %s115 = sphi 0, %s117
      %s118 = sphi 0, %s115
      %s119 = sphi 0, %s118
      %s135 = sphi 0, %s119
      %s139 = sphi 0, %s139
      %s141 = sphi 0, %s139
      %s142 = sphi 0, %s141
      %s156 = sphi 0, %s142
      %s160 = sphi 0, %s160
      %s162 = sphi 0, %s160
      %s163 = sphi 0, %s162
      %s177 = sphi 0, %s163
      %s181 = sphi 0, %s181
      %s183 = sphi 0, %s181
      %s184 = sphi 0, %s183
      %s198 = sphi 0, %s184
      %s202 = sphi 0, %s202
      %s204 = sphi 0, %s202
      %s205 = sphi 0, %s204
      %s219 = sphi 0, %s205
      %s223 = sphi 0, %s223
      %s225 = sphi 0, %s223
      %s226 = sphi 0, %s225
      %s240 = sphi 0, %s226
      %s244 = sphi 0, %s244
      %s246 = sphi 0, %s244
      %s247 = sphi 0, %s246
      %s261 = sphi 0, %s247
      %s265 = sphi 0, %s265
      %s267 = sphi 0, %s265
      %s268 = sphi 0, %s267
      %s282 = sphi 0, %s268
      %s286 = sphi 0, %s286
      %s288 = sphi 0, %s286
      %s289 = sphi 0, %s288
      %s303 = sphi 0, %s289
      %s307 = sphi 0, %s307
      %s309 = sphi 0, %s307
      %s310 = sphi 0, %s309
      %s324 = sphi 0, %s310
      %s328 = sphi 0, %s328
      %s330 = sphi 0, %s328
      %s331 = sphi 0, %s330
      %s345 = sphi 0, %s331
      %s349 = sphi 0, %s349
      %s351 = sphi 0, %s349
      %s352 = sphi 0, %s351
      %s366 = sphi 0, %s352
      %s370 = sphi 0, %s370
      %s372 = sphi 0, %s370
      %s373 = sphi 0, %s372
      %s387 = sphi 0, %s373
      %s393 = sphi 0, %s395
      %s396 = sphi 0, %s393
      %s397 = sphi 0, %s396
      %s413 = sphi 0, %s397
    $region4: #{gnn_sample_forward_batched.1} parent=1 // loop_header_branch
      %30 = sbr.rel (%p28) target = $region8
    $region5: #{gnn_sample_forward_batched.1} parent=1 // loop_body
      %s32 = ssub.s32 %s27, 1
      %s33 = ssub.s32 %s27, 2
      %s34 = sadd.s32 %s27, 1
      %s35 = ssub.s32 %s27, %s34
      %p36 = scmp.eq.s32.totalorder %s35, 0
      %s38 = sadd.s32 %s37, 1
      %s39 = scalar_select %p36, %s37, %s38
      %p42 = pneg %p36
      %p43 = scmp.eq.s32.totalorder %s27, 7
      %p44 = por %p42, %p43
      %p45 = scmp.ne.s32.totalorder %s37, %s40
      %p46 = scmp.eq.s32.totalorder %s27, 0
      %p47 = por %p45, %p46
      %p48 = scmp.ne.s32.totalorder %s37, %s40
      %p49 = scmp.eq.s32.totalorder %s32, 7
      %p50 = por %p48, %p49
      %p51 = scmp.ne.s32.totalorder %s40, %s41
      %p52 = scmp.eq.s32.totalorder %s32, 0
      %p53 = por %p51, %p52
      %p54 = scmp.ne.s32.totalorder %s40, %s41
      %p55 = scmp.eq.s32.totalorder %s33, 7
      %p56 = por %p54, %p55
      %p58 = scmp.ne.s32.totalorder %s41, %s57
      %p59 = scmp.eq.s32.totalorder %s33, 0
      %p60 = por %p58, %p59
      %s61 = ssub.s32 %s27, %s34
      %p62 = scmp.eq.s32.totalorder %s61, 0
      %s64 = sadd.s32 %s63, 1
      %s65 = scalar_select %p62, %s63, %s64
      %p68 = pneg %p62
      %p69 = scmp.eq.s32.totalorder %s27, 7
      %p70 = por %p68, %p69
      %p71 = scmp.ne.s32.totalorder %s63, %s66
      %p72 = scmp.eq.s32.totalorder %s27, 0
      %p73 = por %p71, %p72
      %p74 = scmp.ne.s32.totalorder %s63, %s66
      %p75 = scmp.eq.s32.totalorder %s32, 7
      %p76 = por %p74, %p75
      %p77 = scmp.ne.s32.totalorder %s66, %s67
      %p78 = scmp.eq.s32.totalorder %s32, 0
      %p79 = por %p77, %p78
      %p80 = scmp.ne.s32.totalorder %s66, %s67
      %p81 = scmp.eq.s32.totalorder %s33, 7
      %p82 = por %p80, %p81
      %p84 = scmp.ne.s32.totalorder %s67, %s83
      %p85 = scmp.eq.s32.totalorder %s33, 0
      %p86 = por %p84, %p85
      %s87 = ssub.s32 %s27, %s34
      %p88 = scmp.eq.s32.totalorder %s87, 0
      %s90 = sadd.s32 %s89, 1
      %s91 = scalar_select %p88, %s89, %s90
      %p94 = pneg %p88
      %p95 = scmp.eq.s32.totalorder %s27, 7
      %p96 = por %p94, %p95
      %p97 = scmp.ne.s32.totalorder %s89, %s92
      %p98 = scmp.eq.s32.totalorder %s27, 0
      %p99 = por %p97, %p98
      %p100 = scmp.ne.s32.totalorder %s89, %s92
      %p101 = scmp.eq.s32.totalorder %s32, 7
      %p102 = por %p100, %p101
      %p103 = scmp.ne.s32.totalorder %s92, %s93
      %p104 = scmp.eq.s32.totalorder %s32, 0
      %p105 = por %p103, %p104
      %p106 = scmp.ne.s32.totalorder %s92, %s93
      %p107 = scmp.eq.s32.totalorder %s33, 7
      %p108 = por %p106, %p107
      %p110 = scmp.ne.s32.totalorder %s93, %s109
      %p111 = scmp.eq.s32.totalorder %s33, 0
      %p112 = por %p110, %p111
      %s113 = ssub.s32 %s27, %s34
      %p114 = scmp.eq.s32.totalorder %s113, 0
      %s116 = sadd.s32 %s115, 1
      %s117 = scalar_select %p114, %s115, %s116
      %p120 = pneg %p114
      %p121 = scmp.eq.s32.totalorder %s27, 7
      %p122 = por %p120, %p121
      %p123 = scmp.ne.s32.totalorder %s115, %s118
      %p124 = scmp.eq.s32.totalorder %s27, 0
      %p125 = por %p123, %p124
      %p126 = scmp.ne.s32.totalorder %s115, %s118
      %p127 = scmp.eq.s32.totalorder %s32, 7
      %p128 = por %p126, %p127
      %p129 = scmp.ne.s32.totalorder %s118, %s119
      %p130 = scmp.eq.s32.totalorder %s32, 0
      %p131 = por %p129, %p130
      %p132 = scmp.ne.s32.totalorder %s118, %s119
      %p133 = scmp.eq.s32.totalorder %s33, 7
      %p134 = por %p132, %p133
      %p136 = scmp.ne.s32.totalorder %s119, %s135
      %p137 = scmp.eq.s32.totalorder %s33, 0
      %p138 = por %p136, %p137
      %s140 = sadd.s32 %s139, 1
      %p143 = scmp.eq.s32.totalorder %s27, 7
      %p144 = scmp.ne.s32.totalorder %s139, %s141
      %p145 = scmp.eq.s32.totalorder %s27, 0
      %p146 = por %p144, %p145
      %p147 = scmp.ne.s32.totalorder %s139, %s141
      %p148 = scmp.eq.s32.totalorder %s32, 7
      %p149 = por %p147, %p148
      %p150 = scmp.ne.s32.totalorder %s141, %s142
      %p151 = scmp.eq.s32.totalorder %s32, 0
      %p152 = por %p150, %p151
      %p153 = scmp.ne.s32.totalorder %s141, %s142
      %p154 = scmp.eq.s32.totalorder %s33, 7
      %p155 = por %p153, %p154
      %p157 = scmp.ne.s32.totalorder %s142, %s156
      %p158 = scmp.eq.s32.totalorder %s33, 0
      %p159 = por %p157, %p158
      %s161 = sadd.s32 %s160, 1
      %p164 = scmp.eq.s32.totalorder %s27, 7
      %p165 = scmp.ne.s32.totalorder %s160, %s162
      %p166 = scmp.eq.s32.totalorder %s27, 0
      %p167 = por %p165, %p166
      %p168 = scmp.ne.s32.totalorder %s160, %s162
      %p169 = scmp.eq.s32.totalorder %s32, 7
      %p170 = por %p168, %p169
      %p171 = scmp.ne.s32.totalorder %s162, %s163
      %p172 = scmp.eq.s32.totalorder %s32, 0
      %p173 = por %p171, %p172
      %p174 = scmp.ne.s32.totalorder %s162, %s163
      %p175 = scmp.eq.s32.totalorder %s33, 7
      %p176 = por %p174, %p175
      %p178 = scmp.ne.s32.totalorder %s163, %s177
      %p179 = scmp.eq.s32.totalorder %s33, 0
      %p180 = por %p178, %p179
      %s182 = sadd.s32 %s181, 1
      %p185 = scmp.eq.s32.totalorder %s27, 7
      %p186 = scmp.ne.s32.totalorder %s181, %s183
      %p187 = scmp.eq.s32.totalorder %s27, 0
      %p188 = por %p186, %p187
      %p189 = scmp.ne.s32.totalorder %s181, %s183
      %p190 = scmp.eq.s32.totalorder %s32, 7
      %p191 = por %p189, %p190
      %p192 = scmp.ne.s32.totalorder %s183, %s184
      %p193 = scmp.eq.s32.totalorder %s32, 0
      %p194 = por %p192, %p193
      %p195 = scmp.ne.s32.totalorder %s183, %s184
      %p196 = scmp.eq.s32.totalorder %s33, 7
      %p197 = por %p195, %p196
      %p199 = scmp.ne.s32.totalorder %s184, %s198
      %p200 = scmp.eq.s32.totalorder %s33, 0
      %p201 = por %p199, %p200
      %s203 = sadd.s32 %s202, 1
      %p206 = scmp.eq.s32.totalorder %s27, 7
      %p207 = scmp.ne.s32.totalorder %s202, %s204
      %p208 = scmp.eq.s32.totalorder %s27, 0
      %p209 = por %p207, %p208
      %p210 = scmp.ne.s32.totalorder %s202, %s204
      %p211 = scmp.eq.s32.totalorder %s32, 7
      %p212 = por %p210, %p211
      %p213 = scmp.ne.s32.totalorder %s204, %s205
      %p214 = scmp.eq.s32.totalorder %s32, 0
      %p215 = por %p213, %p214
      %p216 = scmp.ne.s32.totalorder %s204, %s205
      %p217 = scmp.eq.s32.totalorder %s33, 7
      %p218 = por %p216, %p217
      %p220 = scmp.ne.s32.totalorder %s205, %s219
      %p221 = scmp.eq.s32.totalorder %s33, 0
      %p222 = por %p220, %p221
      %s224 = sadd.s32 %s223, 1
      %p227 = scmp.eq.s32.totalorder %s27, 7
      %p228 = scmp.ne.s32.totalorder %s223, %s225
      %p229 = scmp.eq.s32.totalorder %s27, 0
      %p230 = por %p228, %p229
      %p231 = scmp.ne.s32.totalorder %s223, %s225
      %p232 = scmp.eq.s32.totalorder %s32, 7
      %p233 = por %p231, %p232
      %p234 = scmp.ne.s32.totalorder %s225, %s226
      %p235 = scmp.eq.s32.totalorder %s32, 0
      %p236 = por %p234, %p235
      %p237 = scmp.ne.s32.totalorder %s225, %s226
      %p238 = scmp.eq.s32.totalorder %s33, 7
      %p239 = por %p237, %p238
      %p241 = scmp.ne.s32.totalorder %s226, %s240
      %p242 = scmp.eq.s32.totalorder %s33, 0
      %p243 = por %p241, %p242
      %s245 = sadd.s32 %s244, 1
      %p248 = scmp.eq.s32.totalorder %s27, 7
      %p249 = scmp.ne.s32.totalorder %s244, %s246
      %p250 = scmp.eq.s32.totalorder %s27, 0
      %p251 = por %p249, %p250
      %p252 = scmp.ne.s32.totalorder %s244, %s246
      %p253 = scmp.eq.s32.totalorder %s32, 7
      %p254 = por %p252, %p253
      %p255 = scmp.ne.s32.totalorder %s246, %s247
      %p256 = scmp.eq.s32.totalorder %s32, 0
      %p257 = por %p255, %p256
      %p258 = scmp.ne.s32.totalorder %s246, %s247
      %p259 = scmp.eq.s32.totalorder %s33, 7
      %p260 = por %p258, %p259
      %p262 = scmp.ne.s32.totalorder %s247, %s261
      %p263 = scmp.eq.s32.totalorder %s33, 0
      %p264 = por %p262, %p263
      %s266 = sadd.s32 %s265, 1
      %p269 = scmp.eq.s32.totalorder %s27, 7
      %p270 = scmp.ne.s32.totalorder %s265, %s267
      %p271 = scmp.eq.s32.totalorder %s27, 0
      %p272 = por %p270, %p271
      %p273 = scmp.ne.s32.totalorder %s265, %s267
      %p274 = scmp.eq.s32.totalorder %s32, 7
      %p275 = por %p273, %p274
      %p276 = scmp.ne.s32.totalorder %s267, %s268
      %p277 = scmp.eq.s32.totalorder %s32, 0
      %p278 = por %p276, %p277
      %p279 = scmp.ne.s32.totalorder %s267, %s268
      %p280 = scmp.eq.s32.totalorder %s33, 7
      %p281 = por %p279, %p280
      %p283 = scmp.ne.s32.totalorder %s268, %s282
      %p284 = scmp.eq.s32.totalorder %s33, 0
      %p285 = por %p283, %p284
      %s287 = sadd.s32 %s286, 1
      %p290 = scmp.eq.s32.totalorder %s27, 7
      %p291 = scmp.ne.s32.totalorder %s286, %s288
      %p292 = scmp.eq.s32.totalorder %s27, 0
      %p293 = por %p291, %p292
      %p294 = scmp.ne.s32.totalorder %s286, %s288
      %p295 = scmp.eq.s32.totalorder %s32, 7
      %p296 = por %p294, %p295
      %p297 = scmp.ne.s32.totalorder %s288, %s289
      %p298 = scmp.eq.s32.totalorder %s32, 0
      %p299 = por %p297, %p298
      %p300 = scmp.ne.s32.totalorder %s288, %s289
      %p301 = scmp.eq.s32.totalorder %s33, 7
      %p302 = por %p300, %p301
      %p304 = scmp.ne.s32.totalorder %s289, %s303
      %p305 = scmp.eq.s32.totalorder %s33, 0
      %p306 = por %p304, %p305
      %s308 = sadd.s32 %s307, 1
      %p311 = scmp.eq.s32.totalorder %s27, 7
      %p312 = scmp.ne.s32.totalorder %s307, %s309
      %p313 = scmp.eq.s32.totalorder %s27, 0
      %p314 = por %p312, %p313
      %p315 = scmp.ne.s32.totalorder %s307, %s309
      %p316 = scmp.eq.s32.totalorder %s32, 7
      %p317 = por %p315, %p316
      %p318 = scmp.ne.s32.totalorder %s309, %s310
      %p319 = scmp.eq.s32.totalorder %s32, 0
      %p320 = por %p318, %p319
      %p321 = scmp.ne.s32.totalorder %s309, %s310
      %p322 = scmp.eq.s32.totalorder %s33, 7
      %p323 = por %p321, %p322
      %p325 = scmp.ne.s32.totalorder %s310, %s324
      %p326 = scmp.eq.s32.totalorder %s33, 0
      %p327 = por %p325, %p326
      %s329 = sadd.s32 %s328, 1
      %p332 = scmp.eq.s32.totalorder %s27, 7
      %p333 = scmp.ne.s32.totalorder %s328, %s330
      %p334 = scmp.eq.s32.totalorder %s27, 0
      %p335 = por %p333, %p334
      %p336 = scmp.ne.s32.totalorder %s328, %s330
      %p337 = scmp.eq.s32.totalorder %s32, 7
      %p338 = por %p336, %p337
      %p339 = scmp.ne.s32.totalorder %s330, %s331
      %p340 = scmp.eq.s32.totalorder %s32, 0
      %p341 = por %p339, %p340
      %p342 = scmp.ne.s32.totalorder %s330, %s331
      %p343 = scmp.eq.s32.totalorder %s33, 7
      %p344 = por %p342, %p343
      %p346 = scmp.ne.s32.totalorder %s331, %s345
      %p347 = scmp.eq.s32.totalorder %s33, 0
      %p348 = por %p346, %p347
      %s350 = sadd.s32 %s349, 1
      %p353 = scmp.eq.s32.totalorder %s27, 7
      %p354 = scmp.ne.s32.totalorder %s349, %s351
      %p355 = scmp.eq.s32.totalorder %s27, 0
      %p356 = por %p354, %p355
      %p357 = scmp.ne.s32.totalorder %s349, %s351
      %p358 = scmp.eq.s32.totalorder %s32, 7
      %p359 = por %p357, %p358
      %p360 = scmp.ne.s32.totalorder %s351, %s352
      %p361 = scmp.eq.s32.totalorder %s32, 0
      %p362 = por %p360, %p361
      %p363 = scmp.ne.s32.totalorder %s351, %s352
      %p364 = scmp.eq.s32.totalorder %s33, 7
      %p365 = por %p363, %p364
      %p367 = scmp.ne.s32.totalorder %s352, %s366
      %p368 = scmp.eq.s32.totalorder %s33, 0
      %p369 = por %p367, %p368
      %s371 = sadd.s32 %s370, 1
      %p374 = scmp.eq.s32.totalorder %s27, 7
      %p375 = scmp.ne.s32.totalorder %s370, %s372
      %p376 = scmp.eq.s32.totalorder %s27, 0
      %p377 = por %p375, %p376
      %p378 = scmp.ne.s32.totalorder %s370, %s372
      %p379 = scmp.eq.s32.totalorder %s32, 7
      %p380 = por %p378, %p379
      %p381 = scmp.ne.s32.totalorder %s372, %s373
      %p382 = scmp.eq.s32.totalorder %s32, 0
      %p383 = por %p381, %p382
      %p384 = scmp.ne.s32.totalorder %s372, %s373
      %p385 = scmp.eq.s32.totalorder %s33, 7
      %p386 = por %p384, %p385
      %p388 = scmp.ne.s32.totalorder %s373, %s387
      %p389 = scmp.eq.s32.totalorder %s33, 0
      %p390 = por %p388, %p389
      %s391 = ssub.s32 %s27, %s34
      %p392 = scmp.eq.s32.totalorder %s391, 0
      %s394 = sadd.s32 %s393, 1
      %s395 = scalar_select %p392, %s393, %s394
      %p398 = pneg %p392
      %p399 = scmp.eq.s32.totalorder %s27, 7
      %p400 = por %p398, %p399
      %p401 = scmp.ne.s32.totalorder %s393, %s396
      %p402 = scmp.eq.s32.totalorder %s27, 0
      %p403 = por %p401, %p402
      %p404 = scmp.ne.s32.totalorder %s393, %s396
      %p405 = scmp.eq.s32.totalorder %s32, 7
      %p406 = por %p404, %p405
      %p407 = scmp.ne.s32.totalorder %s396, %s397
      %p408 = scmp.eq.s32.totalorder %s32, 0
      %p409 = por %p407, %p408
      %p410 = scmp.ne.s32.totalorder %s396, %s397
      %p411 = scmp.eq.s32.totalorder %s33, 7
      %p412 = por %p410, %p411
      %p414 = scmp.ne.s32.totalorder %s397, %s413
      %p415 = scmp.eq.s32.totalorder %s33, 0
      %p416 = por %p414, %p415
      %p417 = scmp.le.s32.totalorder 1, %s27
      %p418 = scmp.lt.s32.totalorder %s27, 9
      %p419 = pnand %p417, %p418
      %p420 = pneg %p419
      // Predicated region
      $region9: #{gnn_sample_forward_batched.1} parent=5 // pred_check
        _
      $region10: #{gnn_sample_forward_batched.1} parent=5 // pred_check_branch
        %422 = sbr.rel (%p419) target = $region12
      $region11: #{gnn_sample_forward_batched.1} parent=5 // pred_region
        %s423 = ssub.s32 %s27, 1
        // Predicated region
        $region13: #{gnn_sample_forward_batched.1} parent=11 // pred_check
          %p424 = pneg %p152
        $region14: #{gnn_sample_forward_batched.1} parent=11 // pred_check_branch
          %426 = sbr.rel (%p424) target = $region16
        $region15: #{gnn_sample_forward_batched.1} parent=11 // pred_region
          _
        $region16: #{gnn_sample_forward_batched.1} parent=11 // pred_fallthru
          _
        // Predicated region
        $region17: #{gnn_sample_forward_batched.1} parent=11 // pred_check
          %p427 = pneg %p173
        $region18: #{gnn_sample_forward_batched.1} parent=11 // pred_check_branch
          %429 = sbr.rel (%p427) target = $region20
        $region19: #{gnn_sample_forward_batched.1} parent=11 // pred_region
          _
        $region20: #{gnn_sample_forward_batched.1} parent=11 // pred_fallthru
          _
        // Predicated region
        $region21: #{gnn_sample_forward_batched.1} parent=11 // pred_check
          %p430 = pneg %p194
        $region22: #{gnn_sample_forward_batched.1} parent=11 // pred_check_branch
          %432 = sbr.rel (%p430) target = $region24
        $region23: #{gnn_sample_forward_batched.1} parent=11 // pred_region
          _
        $region24: #{gnn_sample_forward_batched.1} parent=11 // pred_fallthru
          _
        // Predicated region
        $region25: #{gnn_sample_forward_batched.1} parent=11 // pred_check
          %p433 = pneg %p215
        $region26: #{gnn_sample_forward_batched.1} parent=11 // pred_check_branch
          %435 = sbr.rel (%p433) target = $region28
        $region27: #{gnn_sample_forward_batched.1} parent=11 // pred_region
          _
        $region28: #{gnn_sample_forward_batched.1} parent=11 // pred_fallthru
          _
        // Predicated region
        $region29: #{gnn_sample_forward_batched.1} parent=11 // pred_check
          %p436 = pneg %p236
        $region30: #{gnn_sample_forward_batched.1} parent=11 // pred_check_branch
          %438 = sbr.rel (%p436) target = $region32
        $region31: #{gnn_sample_forward_batched.1} parent=11 // pred_region
          _
        $region32: #{gnn_sample_forward_batched.1} parent=11 // pred_fallthru
          _
        // Predicated region
        $region33: #{gnn_sample_forward_batched.1} parent=11 // pred_check
          %p439 = pneg %p257
        $region34: #{gnn_sample_forward_batched.1} parent=11 // pred_check_branch
          %441 = sbr.rel (%p439) target = $region36
        $region35: #{gnn_sample_forward_batched.1} parent=11 // pred_region
          _
        $region36: #{gnn_sample_forward_batched.1} parent=11 // pred_fallthru
          _
        // Predicated region
        $region37: #{gnn_sample_forward_batched.1} parent=11 // pred_check
          %p442 = pneg %p278
        $region38: #{gnn_sample_forward_batched.1} parent=11 // pred_check_branch
          %444 = sbr.rel (%p442) target = $region40
        $region39: #{gnn_sample_forward_batched.1} parent=11 // pred_region
          _
        $region40: #{gnn_sample_forward_batched.1} parent=11 // pred_fallthru
          _
        // Predicated region
        $region41: #{gnn_sample_forward_batched.1} parent=11 // pred_check
          %p445 = pneg %p299
        $region42: #{gnn_sample_forward_batched.1} parent=11 // pred_check_branch
          %447 = sbr.rel (%p445) target = $region44
        $region43: #{gnn_sample_forward_batched.1} parent=11 // pred_region
          _
        $region44: #{gnn_sample_forward_batched.1} parent=11 // pred_fallthru
          _
        // Predicated region
        $region45: #{gnn_sample_forward_batched.1} parent=11 // pred_check
          %p448 = pneg %p320
        $region46: #{gnn_sample_forward_batched.1} parent=11 // pred_check_branch
          %450 = sbr.rel (%p448) target = $region48
        $region47: #{gnn_sample_forward_batched.1} parent=11 // pred_region
          _
        $region48: #{gnn_sample_forward_batched.1} parent=11 // pred_fallthru
          _
        // Predicated region
        $region49: #{gnn_sample_forward_batched.1} parent=11 // pred_check
          %p451 = pneg %p341
        $region50: #{gnn_sample_forward_batched.1} parent=11 // pred_check_branch
          %453 = sbr.rel (%p451) target = $region52
        $region51: #{gnn_sample_forward_batched.1} parent=11 // pred_region
          _
        $region52: #{gnn_sample_forward_batched.1} parent=11 // pred_fallthru
          _
        // Predicated region
        $region53: #{gnn_sample_forward_batched.1} parent=11 // pred_check
          %p454 = pneg %p362
        $region54: #{gnn_sample_forward_batched.1} parent=11 // pred_check_branch
          %456 = sbr.rel (%p454) target = $region56
        $region55: #{gnn_sample_forward_batched.1} parent=11 // pred_region
          _
        $region56: #{gnn_sample_forward_batched.1} parent=11 // pred_fallthru
          _
        // Predicated region
        $region57: #{gnn_sample_forward_batched.1} parent=11 // pred_check
          %p457 = pneg %p383
        $region58: #{gnn_sample_forward_batched.1} parent=11 // pred_check_branch
          %459 = sbr.rel (%p457) target = $region60
        $region59: #{gnn_sample_forward_batched.1} parent=11 // pred_region
          _
        $region60: #{gnn_sample_forward_batched.1} parent=11 // pred_fallthru
          _
      $region12: #{gnn_sample_forward_batched.1} parent=5 // pred_fallthru
        _
      %p460 = scmp.lt.s32.totalorder %s27, 8
      // Predicated region
      $region61: #{gnn_sample_forward_batched.1} parent=5 // pred_check
        %p461 = pneg %p460
      $region62: #{gnn_sample_forward_batched.1} parent=5 // pred_check_branch
        %463 = sbr.rel (%p461) target = $region64
      $region63: #{gnn_sample_forward_batched.1} parent=5 // pred_region
        // Predicated region
        $region65: #{gnn_sample_forward_batched.1} parent=63 // pred_check
          %p464 = pneg %p47
        $region66: #{gnn_sample_forward_batched.1} parent=63 // pred_check_branch
          %466 = sbr.rel (%p464) target = $region68
        $region67: #{gnn_sample_forward_batched.1} parent=63 // pred_region
          %p467 = scmp.lt.s32.totalorder %s27, 7
          %s468 = scalar_select %p467, %s27, 7
          %s469 = scalar_lea.vmem %s0, %s468
        $region68: #{gnn_sample_forward_batched.1} parent=63 // pred_fallthru
          _
        // Predicated region
        $region69: #{gnn_sample_forward_batched.1} parent=63 // pred_check
          %p470 = pneg %p73
        $region70: #{gnn_sample_forward_batched.1} parent=63 // pred_check_branch
          %472 = sbr.rel (%p470) target = $region72
        $region71: #{gnn_sample_forward_batched.1} parent=63 // pred_region
          %p473 = scmp.lt.s32.totalorder %s27, 7
          %s474 = scalar_select %p473, %s27, 7
          %s475 = scalar_lea.vmem %s1, %s474
        $region72: #{gnn_sample_forward_batched.1} parent=63 // pred_fallthru
          _
        // Predicated region
        $region73: #{gnn_sample_forward_batched.1} parent=63 // pred_check
          %p476 = pneg %p99
        $region74: #{gnn_sample_forward_batched.1} parent=63 // pred_check_branch
          %478 = sbr.rel (%p476) target = $region76
        $region75: #{gnn_sample_forward_batched.1} parent=63 // pred_region
          %p479 = scmp.lt.s32.totalorder %s27, 7
          %s480 = scalar_select %p479, %s27, 7
          %s481 = scalar_lea.vmem %s2, %s480
        $region76: #{gnn_sample_forward_batched.1} parent=63 // pred_fallthru
          _
        // Predicated region
        $region77: #{gnn_sample_forward_batched.1} parent=63 // pred_check
          %p482 = pneg %p125
        $region78: #{gnn_sample_forward_batched.1} parent=63 // pred_check_branch
          %484 = sbr.rel (%p482) target = $region80
        $region79: #{gnn_sample_forward_batched.1} parent=63 // pred_region
          %p485 = scmp.lt.s32.totalorder %s27, 7
          %s486 = scalar_select %p485, %s27, 7
          %s487 = smul.addr %s486, 10
          %s488 = smul.addr %s487, 4
          %s489 = scalar_lea.vmem %s3, %s488
        $region80: #{gnn_sample_forward_batched.1} parent=63 // pred_fallthru
          _
      $region64: #{gnn_sample_forward_batched.1} parent=5 // pred_fallthru
        _
      %p490 = scmp.le.s32.totalorder 1, %s27
      %p491 = scmp.lt.s32.totalorder %s27, 9
      %p492 = pnand %p490, %p491
      %p493 = pneg %p492
      // Predicated region
      $region81: #{gnn_sample_forward_batched.1} parent=5 // pred_check
        _
      $region82: #{gnn_sample_forward_batched.1} parent=5 // pred_check_branch
        %495 = sbr.rel (%p492) target = $region84
      $region83: #{gnn_sample_forward_batched.1} parent=5 // pred_region
        %s496 = ssub.s32 %s27, 1
        %p497 = scmp.lt.s32.totalorder %s32, 7
        %s498 = scalar_select %p497, %s32, 7
        %s499 = scalar_lea.vmem %s0, %s498
        %p500 = pneg %p53
        %p501 = pneg %p50
        %p502 = scmp.lt.s32.totalorder %s32, 7
        %s503 = scalar_select %p502, %s32, 7
        %s504 = scalar_lea.vmem %s1, %s503
        %p505 = pneg %p79
        %p506 = pneg %p76
        %p507 = scmp.lt.s32.totalorder %s32, 7
        %s508 = scalar_select %p507, %s32, 7
        %s509 = scalar_lea.vmem %s2, %s508
        %p510 = pneg %p105
        %p511 = pneg %p102
        %p512 = scmp.lt.s32.totalorder %s32, 7
        %s513 = scalar_select %p512, %s32, 7
        %s514 = smul.addr %s513, 10
        %s515 = smul.addr %s514, 4
        %s516 = scalar_lea.vmem %s3, %s515
        %p517 = pneg %p131
        %p518 = pneg %p128
        %p519 = pneg %p152
        %p520 = pneg %p149
        %p521 = pneg %p173
        %p522 = pneg %p170
        %p523 = pneg %p194
        %p524 = pneg %p191
        %p525 = pneg %p215
        %p526 = pneg %p212
        %p527 = pneg %p236
        %p528 = pneg %p233
        %p529 = pneg %p257
        %p530 = pneg %p254
        %p531 = pneg %p278
        %p532 = pneg %p275
        %p533 = pneg %p299
        %p534 = pneg %p296
        %p535 = pneg %p320
        %p536 = pneg %p317
        %p537 = pneg %p341
        %p538 = pneg %p338
        %p539 = pneg %p362
        %p540 = pneg %p359
        %p541 = pneg %p383
        %p542 = pneg %p380
        %p543 = pneg %p409
        %p544 = pneg %p406
        %s545 = sand.u32 %s396, 1
        %s546 = scalar_lea.sflag [#allocation4], %s545
        %s547 = sand.u32 %s396, 1
        %s548 = scalar_lea.vmem [#allocation3], %s547
        %p549 = scmp.lt.s32.totalorder %s32, 7
        %s550 = scalar_select %p549, %s32, 7
        %s551 = scalar_lea.vmem %s0, %s550
        %p552 = scmp.lt.s32.totalorder %s32, 7
        %s553 = scalar_select %p552, %s32, 7
        %s554 = scalar_lea.vmem %s1, %s553
        %p555 = scmp.lt.s32.totalorder %s32, 7
        %s556 = scalar_select %p555, %s32, 7
        %s557 = scalar_lea.vmem %s2, %s556
        %p558 = scmp.lt.s32.totalorder %s32, 7
        %s559 = scalar_select %p558, %s32, 7
        %s560 = smul.addr %s559, 10
        %s561 = smul.addr %s560, 4
        %s562 = scalar_lea.vmem %s3, %s561
        %v564 = vlaneseq
        %v565 = vshrl.u32 %v564, 7
        %v566 = vadd.s32 %v565, 8
        %v567 = vld [vmem:[%s551] sm:$0x1]
        %v568 = vlaneseq
        %v569 = vshrl.u32 %v568, 7
        %v570 = vsub.s32 0, %v569
        %v571 = vrot.slane %v567, %v570
        %vm572 = vcmp.eq.s32.totalorder %v565, %v571
        %vm573 = vcmp.eq.s32.totalorder %v566, %v571
        %v574 = vld [vmem:[%s557] sm:$0x1]
        %v576 = vlaneseq
        %v577 = vshrl.u32 %v576, 7
        %v578 = vsub.s32 0, %v577
        %v579 = vrot.slane %v574, %v578
        %v581 = vsel %vm572, %v579, 0.0
        %v582 = vsel %vm573, %v579, 0.0
        %v583 = vpack.c.bf16 %v582, %v581
        %v584 = vld [vmem:[%s554] sm:$0x1]
        %v585 = vlaneseq
        %v586 = vshrl.u32 %v585, 7
        %v587 = vsub.s32 0, %v586
        %v588 = vrot.slane %v584, %v587
        %vm589 = vcmp.eq.s32.totalorder %v565, %v588
        %vm590 = vcmp.eq.s32.totalorder %v566, %v588
        %v591 = vsel %vm589, 1, 0
        %v592 = vsel %vm590, 1, 0
        %v593 = vcvt.s32.f32 %v591
        %v594 = vcvt.s32.f32 %v592
        %v595 = vpack.c.bf16 %v594, %v593
        %vm596 = vcmask 392192
        %v598 = vsel %vm596, %v583, 0
        %v601 = vsel %vm596, %v595, 0
        %603 = vmatprep.subr.bf16.mxu0 0
        %604 = vmatpush1.bf16.xpose.msra.mxu0 0
        %605 = vmatprep.subr.bf16.mxu0 0
        %606 = vmatpush1.bf16.xpose.msra.mxu0 0
        %607 = vmatprep.subr.bf16.mxu0 0
        %608 = vmatpush1.bf16.xpose.msra.mxu0 0
        %609 = vmatprep.subr.bf16.mxu0 0
        %610 = vmatpush1.bf16.xpose.msra.mxu0 0
        %611 = vmatprep.subr.bf16.mxu0 0
        %612 = vmatpush1.bf16.xpose.msra.mxu0 0
        %613 = vmatprep.subr.bf16.mxu0 0
        %614 = vmatpush1.bf16.xpose.msra.mxu0 0
        %615 = vmatprep.subr.bf16.mxu0 0
        %616 = vmatpush1.bf16.xpose.msra.mxu0 0
        %617 = vmatprep.subr.bf16.mxu0 0
        %618 = vmatpush1.bf16.xpose.msra.mxu0 %v601
        %619 = vmatprep.subr.bf16.mxu0 0
        %620 = vmatpush2.bf16.xpose.msra.mxu0 0
        %621 = vmatprep.subr.bf16.mxu0 0
        %622 = vmatpush2.bf16.xpose.msra.mxu0 0
        %623 = vmatprep.subr.bf16.mxu0 0
        %624 = vmatpush2.bf16.xpose.msra.mxu0 0
        %625 = vmatprep.subr.bf16.mxu0 0
        %626 = vmatpush2.bf16.xpose.msra.mxu0 0
        %627 = vmatprep.subr.bf16.mxu0 0
        %628 = vmatpush2.bf16.xpose.msra.mxu0 0
        %629 = vmatprep.subr.bf16.mxu0 0
        %630 = vmatpush2.bf16.xpose.msra.mxu0 0
        %631 = vmatprep.subr.bf16.mxu0 0
        %632 = vmatpush2.bf16.xpose.msra.mxu0 0
        %633 = vmatprep.subr.bf16.mxu0 0
        %634 = vmatpush2.bf16.xpose.msra.mxu0 0
        %635 = vmatprep.mubr.bf16.mxu0 0
        %636 = vmatmul.mubr.bf16.gmra.mxu0 %v598
        %v637 = vpop.f32.mrf.mxu0
        %v638 = vadd.f32 0.0, %v637
        %v639 = vpop.f32.mrf.mxu0
        %v640 = vpop.f32.mrf.mxu0
        %v641 = vadd.f32 0.0, %v640
        %v642 = vpop.f32.mrf.mxu0
        %643 = vdwg.mxu0
        %v644 = vpack.c.bf16 %v641, %v638
        %v645 = vld [vmem:[%s562] sm:$0xff]
        %v646 = vld [vmem:[%s562 + $0x8] sm:$0xff]
        %v647 = vld [vmem:[%s562 + $0x10] sm:$0xf]
        %v648 = vld [vmem:[%s562 + $0x14] sm:$0xff]
        %v649 = vld [vmem:[%s562 + $0x1c] sm:$0xff]
        %v650 = vld [vmem:[%s562 + $0x24] sm:$0xf]
        %v657 = vunpack.c.l.b16 %v645
        %v658 = vunpack.c.h.b16 %v645
        %v659 = vunpack.c.l.b16 %v646
        %v660 = vunpack.c.h.b16 %v646
        %v661 = vunpack.c.l.b16 %v647
        %v662 = vunpack.c.l.b16 %v648
        %v663 = vunpack.c.h.b16 %v648
        %v664 = vunpack.c.l.b16 %v649
        %v665 = vunpack.c.h.b16 %v649
        %v666 = vunpack.c.l.b16 %v650
        %v667 = vpack.c.b16 %v662, %v657
        %v668 = vpack.c.b16 %v663, %v658
        %v669 = vpack.c.b16 %v664, %v659
        %v670 = vpack.c.b16 %v665, %v660
        %v671 = vpack.c.b16 %v666, %v661
        %vm677 = vcmask 130048
        %v679 = vsel %vm677, %v644, 0
        %681 = vmatprep.subr.bf16.mxu0 0
        %682 = vmatpush1.bf16.msra.mxu0 0
        %683 = vmatprep.subr.bf16.mxu0 0
        %684 = vmatpush1.bf16.msra.mxu0 0
        %685 = vmatprep.subr.bf16.mxu0 0
        %686 = vmatpush1.bf16.msra.mxu0 0
        %687 = vmatprep.subr.bf16.mxu0 0
        %688 = vmatpush1.bf16.msra.mxu0 0
        %689 = vmatprep.subr.bf16.mxu0 0
        %690 = vmatpush1.bf16.msra.mxu0 0
        %691 = vmatprep.subr.bf16.mxu0 0
        %692 = vmatpush1.bf16.msra.mxu0 0
        %693 = vmatprep.subr.bf16.mxu0 0
        %694 = vmatpush1.bf16.msra.mxu0 0
        %695 = vmatprep.subr.bf16.mxu0 %v668
        %696 = vmatpush1.bf16.msra.mxu0 %v667
        %697 = vmatprep.subr.bf16.mxu0 0
        %698 = vmatpush2.bf16.msra.mxu0 0
        %699 = vmatprep.subr.bf16.mxu0 0
        %700 = vmatpush2.bf16.msra.mxu0 0
        %701 = vmatprep.subr.bf16.mxu0 0
        %702 = vmatpush2.bf16.msra.mxu0 0
        %703 = vmatprep.subr.bf16.mxu0 0
        %704 = vmatpush2.bf16.msra.mxu0 0
        %705 = vmatprep.subr.bf16.mxu0 0
        %706 = vmatpush2.bf16.msra.mxu0 0
        %707 = vmatprep.subr.bf16.mxu0 0
        %708 = vmatpush2.bf16.msra.mxu0 0
        %709 = vmatprep.subr.bf16.mxu0 0
        %710 = vmatpush2.bf16.msra.mxu0 0
        %711 = vmatprep.subr.bf16.mxu0 0
        %712 = vmatpush2.bf16.msra.mxu0 0
        %713 = vmatprep.mubr.bf16.mxu0 0
        %714 = vmatmul.mubr.bf16.gmra.mxu0 %v679
        %v715 = vpop.f32.mrf.mxu0
        %v716 = vadd.f32 0.0, %v715
        %v717 = vpop.f32.mrf.mxu0
        %v718 = vadd.f32 0.0, %v717
        %v719 = vpop.f32.mrf.mxu0
        %v720 = vadd.f32 0.0, %v719
        %v721 = vpop.f32.mrf.mxu0
        %v722 = vadd.f32 0.0, %v721
        %723 = vdwg.mxu0
        %724 = vmatprep.subr.bf16.mxu0 0
        %725 = vmatpush1.bf16.msra.mxu0 0
        %726 = vmatprep.subr.bf16.mxu0 0
        %727 = vmatpush1.bf16.msra.mxu0 0
        %728 = vmatprep.subr.bf16.mxu0 0
        %729 = vmatpush1.bf16.msra.mxu0 0
        %730 = vmatprep.subr.bf16.mxu0 0
        %731 = vmatpush1.bf16.msra.mxu0 0
        %732 = vmatprep.subr.bf16.mxu0 0
        %733 = vmatpush1.bf16.msra.mxu0 0
        %734 = vmatprep.subr.bf16.mxu0 0
        %735 = vmatpush1.bf16.msra.mxu0 0
        %736 = vmatprep.subr.bf16.mxu0 0
        %737 = vmatpush1.bf16.msra.mxu0 0
        %738 = vmatprep.subr.bf16.mxu0 %v670
        %739 = vmatpush1.bf16.msra.mxu0 %v669
        %740 = vmatprep.subr.bf16.mxu0 0
        %741 = vmatpush2.bf16.msra.mxu0 0
        %742 = vmatprep.subr.bf16.mxu0 0
        %743 = vmatpush2.bf16.msra.mxu0 0
        %744 = vmatprep.subr.bf16.mxu0 0
        %745 = vmatpush2.bf16.msra.mxu0 0
        %746 = vmatprep.subr.bf16.mxu0 0
        %747 = vmatpush2.bf16.msra.mxu0 0
        %748 = vmatprep.subr.bf16.mxu0 0
        %749 = vmatpush2.bf16.msra.mxu0 0
        %750 = vmatprep.subr.bf16.mxu0 0
        %751 = vmatpush2.bf16.msra.mxu0 0
        %752 = vmatprep.subr.bf16.mxu0 0
        %753 = vmatpush2.bf16.msra.mxu0 0
        %754 = vmatprep.subr.bf16.mxu0 0
        %755 = vmatpush2.bf16.msra.mxu0 0
        %756 = vmatprep.mubr.bf16.mxu0 0
        %757 = vmatmul.mubr.bf16.gmra.mxu0 %v679
        %v758 = vpop.f32.mrf.mxu0
        %v759 = vadd.f32 0.0, %v758
        %v760 = vpop.f32.mrf.mxu0
        %v761 = vadd.f32 0.0, %v760
        %v762 = vpop.f32.mrf.mxu0
        %v763 = vadd.f32 0.0, %v762
        %v764 = vpop.f32.mrf.mxu0
        %v765 = vadd.f32 0.0, %v764
        %766 = vdwg.mxu0
        %767 = vmatprep.subr.bf16.mxu0 0
        %768 = vmatpush1.bf16.msra.mxu0 0
        %769 = vmatprep.subr.bf16.mxu0 0
        %770 = vmatpush1.bf16.msra.mxu0 0
        %771 = vmatprep.subr.bf16.mxu0 0
        %772 = vmatpush1.bf16.msra.mxu0 0
        %773 = vmatprep.subr.bf16.mxu0 0
        %774 = vmatpush1.bf16.msra.mxu0 0
        %775 = vmatprep.subr.bf16.mxu0 0
        %776 = vmatpush1.bf16.msra.mxu0 0
        %777 = vmatprep.subr.bf16.mxu0 0
        %778 = vmatpush1.bf16.msra.mxu0 0
        %779 = vmatprep.subr.bf16.mxu0 0
        %780 = vmatpush1.bf16.msra.mxu0 0
        %781 = vmatprep.subr.bf16.mxu0 0
        %782 = vmatpush1.bf16.msra.mxu0 %v671
        %783 = vmatprep.subr.bf16.mxu0 0
        %784 = vmatpush2.bf16.msra.mxu0 0
        %785 = vmatprep.subr.bf16.mxu0 0
        %786 = vmatpush2.bf16.msra.mxu0 0
        %787 = vmatprep.subr.bf16.mxu0 0
        %788 = vmatpush2.bf16.msra.mxu0 0
        %789 = vmatprep.subr.bf16.mxu0 0
        %790 = vmatpush2.bf16.msra.mxu0 0
        %791 = vmatprep.subr.bf16.mxu0 0
        %792 = vmatpush2.bf16.msra.mxu0 0
        %793 = vmatprep.subr.bf16.mxu0 0
        %794 = vmatpush2.bf16.msra.mxu0 0
        %795 = vmatprep.subr.bf16.mxu0 0
        %796 = vmatpush2.bf16.msra.mxu0 0
        %797 = vmatprep.subr.bf16.mxu0 0
        %798 = vmatpush2.bf16.msra.mxu0 0
        %799 = vmatprep.mubr.bf16.mxu0 0
        %800 = vmatmul.mubr.bf16.gmra.mxu0 %v679
        %v801 = vpop.f32.mrf.mxu0
        %v802 = vadd.f32 0.0, %v801
        %v803 = vpop.f32.mrf.mxu0
        %v804 = vpop.f32.mrf.mxu0
        %v805 = vadd.f32 0.0, %v804
        %v806 = vpop.f32.mrf.mxu0
        %807 = vdwg.mxu0
        %v808 = vpack.c.bf16 %v720, %v716
        %v809 = vpack.c.bf16 %v722, %v718
        %v810 = vpack.c.bf16 %v763, %v759
        %v811 = vpack.c.bf16 %v765, %v761
        %v812 = vpack.c.bf16 %v805, %v802
        %v813 = vld [vmem:[%s4] sm:$0xff]
        %v814 = vld [vmem:[%s4 + $0x8] sm:$0xff]
        %v815 = vld [vmem:[%s4 + $0x10] sm:$0xff]
        %v816 = vld [vmem:[%s4 + $0x18] sm:$0xff]
        %v817 = vld [vmem:[%s4 + $0x20] sm:$0xff]
        %v818 = vld [vmem:[%s4 + $0x28] sm:$0xff]
        %v819 = vld [vmem:[%s4 + $0x30] sm:$0xff]
        %v820 = vld [vmem:[%s4 + $0x38] sm:$0xff]
        %v821 = vld [vmem:[%s4 + $0x40] sm:$0xff]
        %v822 = vld [vmem:[%s4 + $0x48] sm:$0xff]
        %v823 = vld [vmem:[%s4 + $0x50] sm:$0xff]
        %v824 = vld [vmem:[%s4 + $0x58] sm:$0xff]
        %v825 = vld [vmem:[%s4 + $0x60] sm:$0xff]
        %v826 = vld [vmem:[%s4 + $0x68] sm:$0xff]
        %v827 = vld [vmem:[%s4 + $0x70] sm:$0xff]
        %v828 = vld [vmem:[%s4 + $0x78] sm:$0xff]
        %v829 = vld [vmem:[%s4 + $0x80] sm:$0xff]
        %v830 = vld [vmem:[%s4 + $0x88] sm:$0xff]
        %v831 = vld [vmem:[%s4 + $0x90] sm:$0xff]
        %v832 = vld [vmem:[%s4 + $0x98] sm:$0xff]
        %v833 = vld [vmem:[%s4 + $0xa0] sm:$0xff]
        %v834 = vld [vmem:[%s4 + $0xa8] sm:$0xff]
        %v835 = vld [vmem:[%s4 + $0xb0] sm:$0xff]
        %v836 = vld [vmem:[%s4 + $0xb8] sm:$0xff]
        %v837 = vld [vmem:[%s4 + $0xc0] sm:$0xff]
        %v838 = vld [vmem:[%s4 + $0xc8] sm:$0xff]
        %v839 = vld [vmem:[%s4 + $0xd0] sm:$0xff]
        %v840 = vld [vmem:[%s4 + $0xd8] sm:$0xff]
        %v841 = vld [vmem:[%s4 + $0xe0] sm:$0xff]
        %v842 = vld [vmem:[%s4 + $0xe8] sm:$0xff]
        %v843 = vld [vmem:[%s4 + $0xf0] sm:$0xff]
        %v844 = vld [vmem:[%s4 + $0xf8] sm:$0xff]
        %v845 = vld [vmem:[%s4 + $0x100] sm:$0xff]
        %v846 = vld [vmem:[%s4 + $0x108] sm:$0xff]
        %v847 = vld [vmem:[%s4 + $0x110] sm:$0xff]
        %v848 = vld [vmem:[%s4 + $0x118] sm:$0xff]
        %v849 = vld [vmem:[%s4 + $0x120] sm:$0xff]
        %v850 = vld [vmem:[%s4 + $0x128] sm:$0xff]
        %v851 = vld [vmem:[%s4 + $0x130] sm:$0xff]
        %v852 = vld [vmem:[%s4 + $0x138] sm:$0xff]
        %v853 = vld [vmem:[%s4 + $0x140] sm:$0xff]
        %v854 = vld [vmem:[%s4 + $0x148] sm:$0xff]
        %v855 = vld [vmem:[%s4 + $0x150] sm:$0xff]
        %v856 = vld [vmem:[%s4 + $0x158] sm:$0xff]
        %v857 = vld [vmem:[%s4 + $0x160] sm:$0xff]
        %v858 = vld [vmem:[%s4 + $0x168] sm:$0xff]
        %v859 = vld [vmem:[%s4 + $0x170] sm:$0xff]
        %v860 = vld [vmem:[%s4 + $0x178] sm:$0xff]
        %v861 = vld [vmem:[%s4 + $0x180] sm:$0xff]
        %v862 = vld [vmem:[%s4 + $0x188] sm:$0xff]
        %v863 = vld [vmem:[%s4 + $0x190] sm:$0xff]
        %v864 = vld [vmem:[%s4 + $0x198] sm:$0xff]
        %v865 = vld [vmem:[%s4 + $0x1a0] sm:$0xff]
        %v866 = vld [vmem:[%s4 + $0x1a8] sm:$0xff]
        %v867 = vld [vmem:[%s4 + $0x1b0] sm:$0xff]
        %v868 = vld [vmem:[%s4 + $0x1b8] sm:$0xff]
        %v869 = vld [vmem:[%s4 + $0x1c0] sm:$0xff]
        %v870 = vld [vmem:[%s4 + $0x1c8] sm:$0xff]
        %v871 = vld [vmem:[%s4 + $0x1d0] sm:$0xff]
        %v872 = vld [vmem:[%s4 + $0x1d8] sm:$0xff]
        %v873 = vld [vmem:[%s4 + $0x1e0] sm:$0xff]
        %v874 = vld [vmem:[%s4 + $0x1e8] sm:$0xff]
        %v875 = vld [vmem:[%s4 + $0x1f0] sm:$0xff]
        %v876 = vld [vmem:[%s4 + $0x1f8] sm:$0xff]
        %v877 = vld [vmem:[%s4 + $0x200] sm:$0xff]
        %v878 = vld [vmem:[%s4 + $0x208] sm:$0xff]
        %v879 = vld [vmem:[%s5] sm:$0xff]
        %v880 = vld [vmem:[%s5 + $0x8] sm:$0xff]
        %v881 = vld [vmem:[%s5 + $0x10] sm:$0xff]
        %v882 = vld [vmem:[%s5 + $0x18] sm:$0xff]
        %v883 = vld [vmem:[%s5 + $0x20] sm:$0xff]
        %v884 = vld [vmem:[%s5 + $0x28] sm:$0xff]
        %v885 = vld [vmem:[%s5 + $0x30] sm:$0xff]
        %v886 = vld [vmem:[%s5 + $0x38] sm:$0xff]
        %v887 = vld [vmem:[%s5 + $0x40] sm:$0xff]
        %v888 = vld [vmem:[%s5 + $0x48] sm:$0xff]
        %v889 = vld [vmem:[%s5 + $0x50] sm:$0xff]
        %v890 = vld [vmem:[%s5 + $0x58] sm:$0xff]
        %v891 = vld [vmem:[%s5 + $0x60] sm:$0xff]
        %v892 = vld [vmem:[%s5 + $0x68] sm:$0xff]
        %v893 = vld [vmem:[%s5 + $0x70] sm:$0xff]
        %v894 = vld [vmem:[%s5 + $0x78] sm:$0xff]
        %v895 = vld [vmem:[%s5 + $0x80] sm:$0xff]
        %v896 = vld [vmem:[%s5 + $0x88] sm:$0xff]
        %v897 = vld [vmem:[%s5 + $0x90] sm:$0xff]
        %v898 = vld [vmem:[%s5 + $0x98] sm:$0xff]
        %v899 = vld [vmem:[%s5 + $0xa0] sm:$0xff]
        %v900 = vld [vmem:[%s5 + $0xa8] sm:$0xff]
        %v901 = vld [vmem:[%s5 + $0xb0] sm:$0xff]
        %v902 = vld [vmem:[%s5 + $0xb8] sm:$0xff]
        %v903 = vld [vmem:[%s5 + $0xc0] sm:$0xff]
        %v904 = vld [vmem:[%s5 + $0xc8] sm:$0xff]
        %v905 = vld [vmem:[%s5 + $0xd0] sm:$0xff]
        %v906 = vld [vmem:[%s5 + $0xd8] sm:$0xff]
        %v907 = vld [vmem:[%s5 + $0xe0] sm:$0xff]
        %v908 = vld [vmem:[%s5 + $0xe8] sm:$0xff]
        %v909 = vld [vmem:[%s5 + $0xf0] sm:$0xff]
        %v910 = vld [vmem:[%s5 + $0xf8] sm:$0xff]
        %v911 = vld [vmem:[%s5 + $0x100] sm:$0xff]
        %v912 = vld [vmem:[%s5 + $0x108] sm:$0xff]
        %v913 = vld [vmem:[%s5 + $0x110] sm:$0xff]
        %v914 = vld [vmem:[%s5 + $0x118] sm:$0xff]
        %v915 = vld [vmem:[%s5 + $0x120] sm:$0xff]
        %v916 = vld [vmem:[%s5 + $0x128] sm:$0xff]
        %v917 = vld [vmem:[%s5 + $0x130] sm:$0xff]
        %v918 = vld [vmem:[%s5 + $0x138] sm:$0xff]
        %v919 = vld [vmem:[%s5 + $0x140] sm:$0xff]
        %v920 = vld [vmem:[%s5 + $0x148] sm:$0xff]
        %v921 = vld [vmem:[%s5 + $0x150] sm:$0xff]
        %v922 = vld [vmem:[%s5 + $0x158] sm:$0xff]
        %v923 = vld [vmem:[%s5 + $0x160] sm:$0xff]
        %v924 = vld [vmem:[%s5 + $0x168] sm:$0xff]
        %v925 = vld [vmem:[%s5 + $0x170] sm:$0xff]
        %v926 = vld [vmem:[%s5 + $0x178] sm:$0xff]
        %v927 = vld [vmem:[%s5 + $0x180] sm:$0xff]
        %v928 = vld [vmem:[%s5 + $0x188] sm:$0xff]
        %v929 = vld [vmem:[%s5 + $0x190] sm:$0xff]
        %v930 = vld [vmem:[%s5 + $0x198] sm:$0xff]
        %v931 = vld [vmem:[%s5 + $0x1a0] sm:$0xff]
        %v932 = vld [vmem:[%s5 + $0x1a8] sm:$0xff]
        %v933 = vld [vmem:[%s5 + $0x1b0] sm:$0xff]
        %v934 = vld [vmem:[%s5 + $0x1b8] sm:$0xff]
        %v935 = vld [vmem:[%s5 + $0x1c0] sm:$0xff]
        %v936 = vld [vmem:[%s5 + $0x1c8] sm:$0xff]
        %v937 = vld [vmem:[%s5 + $0x1d0] sm:$0xff]
        %v938 = vld [vmem:[%s5 + $0x1d8] sm:$0xff]
        %v939 = vld [vmem:[%s5 + $0x1e0] sm:$0xff]
        %v940 = vld [vmem:[%s5 + $0x1e8] sm:$0xff]
        %v941 = vld [vmem:[%s5 + $0x1f0] sm:$0xff]
        %v942 = vld [vmem:[%s5 + $0x1f8] sm:$0xff]
        %v943 = vld [vmem:[%s5 + $0x200] sm:$0xff]
        %v944 = vld [vmem:[%s5 + $0x208] sm:$0xff]
        %v1011 = vunpack.c.l.b16 %v879
        %v1012 = vunpack.c.h.b16 %v879
        %v1013 = vunpack.c.l.b16 %v880
        %v1014 = vunpack.c.h.b16 %v880
        %v1015 = vunpack.c.l.b16 %v881
        %v1016 = vunpack.c.h.b16 %v881
        %v1017 = vunpack.c.l.b16 %v882
        %v1018 = vunpack.c.h.b16 %v882
        %v1019 = vunpack.c.l.b16 %v883
        %v1020 = vunpack.c.h.b16 %v883
        %v1021 = vunpack.c.l.b16 %v884
        %v1022 = vunpack.c.h.b16 %v884
        %v1023 = vunpack.c.l.b16 %v885
        %v1024 = vunpack.c.h.b16 %v885
        %v1025 = vunpack.c.l.b16 %v886
        %v1026 = vunpack.c.h.b16 %v886
        %v1027 = vunpack.c.l.b16 %v887
        %v1028 = vunpack.c.h.b16 %v887
        %v1029 = vunpack.c.l.b16 %v888
        %v1030 = vunpack.c.h.b16 %v888
        %v1031 = vunpack.c.l.b16 %v889
        %v1032 = vunpack.c.h.b16 %v889
        %v1033 = vunpack.c.l.b16 %v890
        %v1034 = vunpack.c.h.b16 %v890
        %v1035 = vunpack.c.l.b16 %v891
        %v1036 = vunpack.c.h.b16 %v891
        %v1037 = vunpack.c.l.b16 %v892
        %v1038 = vunpack.c.h.b16 %v892
        %v1039 = vunpack.c.l.b16 %v893
        %v1040 = vunpack.c.h.b16 %v893
        %v1041 = vunpack.c.l.b16 %v894
        %v1042 = vunpack.c.h.b16 %v894
        %v1043 = vunpack.c.l.b16 %v895
        %v1044 = vunpack.c.h.b16 %v895
        %v1045 = vunpack.c.l.b16 %v896
        %v1046 = vunpack.c.h.b16 %v896
        %v1047 = vunpack.c.l.b16 %v897
        %v1048 = vunpack.c.h.b16 %v897
        %v1049 = vunpack.c.l.b16 %v898
        %v1050 = vunpack.c.h.b16 %v898
        %v1051 = vunpack.c.l.b16 %v899
        %v1052 = vunpack.c.h.b16 %v899
        %v1053 = vunpack.c.l.b16 %v900
        %v1054 = vunpack.c.h.b16 %v900
        %v1055 = vunpack.c.l.b16 %v901
        %v1056 = vunpack.c.h.b16 %v901
        %v1057 = vunpack.c.l.b16 %v902
        %v1058 = vunpack.c.h.b16 %v902
        %v1059 = vunpack.c.l.b16 %v903
        %v1060 = vunpack.c.h.b16 %v903
        %v1061 = vunpack.c.l.b16 %v904
        %v1062 = vunpack.c.h.b16 %v904
        %v1063 = vunpack.c.l.b16 %v905
        %v1064 = vunpack.c.h.b16 %v905
        %v1065 = vunpack.c.l.b16 %v906
        %v1066 = vunpack.c.h.b16 %v906
        %v1067 = vunpack.c.l.b16 %v907
        %v1068 = vunpack.c.h.b16 %v907
        %v1069 = vunpack.c.l.b16 %v908
        %v1070 = vunpack.c.h.b16 %v908
        %v1071 = vunpack.c.l.b16 %v909
        %v1072 = vunpack.c.h.b16 %v909
        %v1073 = vunpack.c.l.b16 %v910
        %v1074 = vunpack.c.h.b16 %v910
        %v1075 = vunpack.c.l.b16 %v911
        %v1076 = vunpack.c.h.b16 %v911
        %v1077 = vunpack.c.l.b16 %v912
        %v1078 = vunpack.c.h.b16 %v912
        %v1079 = vunpack.c.l.b16 %v913
        %v1080 = vunpack.c.h.b16 %v913
        %v1081 = vunpack.c.l.b16 %v914
        %v1082 = vunpack.c.h.b16 %v914
        %v1083 = vunpack.c.l.b16 %v915
        %v1084 = vunpack.c.h.b16 %v915
        %v1085 = vunpack.c.l.b16 %v916
        %v1086 = vunpack.c.h.b16 %v916
        %v1087 = vunpack.c.l.b16 %v917
        %v1088 = vunpack.c.h.b16 %v917
        %v1089 = vunpack.c.l.b16 %v918
        %v1090 = vunpack.c.h.b16 %v918
        %v1091 = vunpack.c.l.b16 %v919
        %v1092 = vunpack.c.h.b16 %v919
        %v1093 = vunpack.c.l.b16 %v920
        %v1094 = vunpack.c.h.b16 %v920
        %v1095 = vunpack.c.l.b16 %v921
        %v1096 = vunpack.c.h.b16 %v921
        %v1097 = vunpack.c.l.b16 %v922
        %v1098 = vunpack.c.h.b16 %v922
        %v1099 = vunpack.c.l.b16 %v923
        %v1100 = vunpack.c.h.b16 %v923
        %v1101 = vunpack.c.l.b16 %v924
        %v1102 = vunpack.c.h.b16 %v924
        %v1103 = vunpack.c.l.b16 %v925
        %v1104 = vunpack.c.h.b16 %v925
        %v1105 = vunpack.c.l.b16 %v926
        %v1106 = vunpack.c.h.b16 %v926
        %v1107 = vunpack.c.l.b16 %v927
        %v1108 = vunpack.c.h.b16 %v927
        %v1109 = vunpack.c.l.b16 %v928
        %v1110 = vunpack.c.h.b16 %v928
        %v1111 = vunpack.c.l.b16 %v929
        %v1112 = vunpack.c.h.b16 %v929
        %v1113 = vunpack.c.l.b16 %v930
        %v1114 = vunpack.c.h.b16 %v930
        %v1115 = vunpack.c.l.b16 %v931
        %v1116 = vunpack.c.h.b16 %v931
        %v1117 = vunpack.c.l.b16 %v932
        %v1118 = vunpack.c.h.b16 %v932
        %v1119 = vunpack.c.l.b16 %v933
        %v1120 = vunpack.c.h.b16 %v933
        %v1121 = vunpack.c.l.b16 %v934
        %v1122 = vunpack.c.h.b16 %v934
        %v1123 = vunpack.c.l.b16 %v935
        %v1124 = vunpack.c.h.b16 %v935
        %v1125 = vunpack.c.l.b16 %v936
        %v1126 = vunpack.c.h.b16 %v936
        %v1127 = vunpack.c.l.b16 %v937
        %v1128 = vunpack.c.h.b16 %v937
        %v1129 = vunpack.c.l.b16 %v938
        %v1130 = vunpack.c.h.b16 %v938
        %v1131 = vunpack.c.l.b16 %v939
        %v1132 = vunpack.c.h.b16 %v939
        %v1133 = vunpack.c.l.b16 %v940
        %v1134 = vunpack.c.h.b16 %v940
        %v1135 = vunpack.c.l.b16 %v941
        %v1136 = vunpack.c.h.b16 %v941
        %v1137 = vunpack.c.l.b16 %v942
        %v1138 = vunpack.c.h.b16 %v942
        %v1139 = vunpack.c.l.b16 %v943
        %v1140 = vunpack.c.h.b16 %v943
        %v1141 = vunpack.c.l.b16 %v944
        %v1142 = vunpack.c.h.b16 %v944
        %v1143 = vpack.c.b16 %v1013, %v1011
        %v1144 = vpack.c.b16 %v1014, %v1012
        %v1145 = vpack.c.b16 %v1017, %v1015
        %v1146 = vpack.c.b16 %v1018, %v1016
        %v1147 = vpack.c.b16 %v1021, %v1019
        %v1148 = vpack.c.b16 %v1022, %v1020
        %v1149 = vpack.c.b16 %v1025, %v1023
        %v1150 = vpack.c.b16 %v1026, %v1024
        %v1151 = vpack.c.b16 %v1029, %v1027
        %v1152 = vpack.c.b16 %v1030, %v1028
        %v1153 = vpack.c.b16 %v1033, %v1031
        %v1154 = vpack.c.b16 %v1034, %v1032
        %v1155 = vpack.c.b16 %v1037, %v1035
        %v1156 = vpack.c.b16 %v1038, %v1036
        %v1157 = vpack.c.b16 %v1041, %v1039
        %v1158 = vpack.c.b16 %v1042, %v1040
        %v1159 = vpack.c.b16 %v1045, %v1043
        %v1160 = vpack.c.b16 %v1046, %v1044
        %v1161 = vpack.c.b16 %v1049, %v1047
        %v1162 = vpack.c.b16 %v1050, %v1048
        %v1163 = vpack.c.b16 %v1053, %v1051
        %v1164 = vpack.c.b16 %v1054, %v1052
        %v1165 = vpack.c.b16 %v1057, %v1055
        %v1166 = vpack.c.b16 %v1058, %v1056
        %v1167 = vpack.c.b16 %v1061, %v1059
        %v1168 = vpack.c.b16 %v1062, %v1060
        %v1169 = vpack.c.b16 %v1065, %v1063
        %v1170 = vpack.c.b16 %v1066, %v1064
        %v1171 = vpack.c.b16 %v1069, %v1067
        %v1172 = vpack.c.b16 %v1070, %v1068
        %v1173 = vpack.c.b16 %v1073, %v1071
        %v1174 = vpack.c.b16 %v1074, %v1072
        %v1175 = vpack.c.b16 %v1077, %v1075
        %v1176 = vpack.c.b16 %v1078, %v1076
        %v1177 = vpack.c.b16 %v1081, %v1079
        %v1178 = vpack.c.b16 %v1082, %v1080
        %v1179 = vpack.c.b16 %v1085, %v1083
        %v1180 = vpack.c.b16 %v1086, %v1084
        %v1181 = vpack.c.b16 %v1089, %v1087
        %v1182 = vpack.c.b16 %v1090, %v1088
        %v1183 = vpack.c.b16 %v1093, %v1091
        %v1184 = vpack.c.b16 %v1094, %v1092
        %v1185 = vpack.c.b16 %v1097, %v1095
        %v1186 = vpack.c.b16 %v1098, %v1096
        %v1187 = vpack.c.b16 %v1101, %v1099
        %v1188 = vpack.c.b16 %v1102, %v1100
        %v1189 = vpack.c.b16 %v1105, %v1103
        %v1190 = vpack.c.b16 %v1106, %v1104
        %v1191 = vpack.c.b16 %v1109, %v1107
        %v1192 = vpack.c.b16 %v1110, %v1108
        %v1193 = vpack.c.b16 %v1113, %v1111
        %v1194 = vpack.c.b16 %v1114, %v1112
        %v1195 = vpack.c.b16 %v1117, %v1115
        %v1196 = vpack.c.b16 %v1118, %v1116
        %v1197 = vpack.c.b16 %v1121, %v1119
        %v1198 = vpack.c.b16 %v1122, %v1120
        %v1199 = vpack.c.b16 %v1125, %v1123
        %v1200 = vpack.c.b16 %v1126, %v1124
        %v1201 = vpack.c.b16 %v1129, %v1127
        %v1202 = vpack.c.b16 %v1130, %v1128
        %v1203 = vpack.c.b16 %v1133, %v1131
        %v1204 = vpack.c.b16 %v1134, %v1132
        %v1205 = vpack.c.b16 %v1137, %v1135
        %v1206 = vpack.c.b16 %v1138, %v1136
        %v1207 = vpack.c.b16 %v1141, %v1139
        %v1208 = vpack.c.b16 %v1142, %v1140
        %v1276 = vsel %vm677, %v671, 0
        %1278 = vmatprep.subr.bf16.mxu0 %v1158
        %1279 = vmatpush1.bf16.msra.mxu0 %v1157
        %1280 = vmatprep.subr.bf16.mxu0 %v1156
        %1281 = vmatpush1.bf16.msra.mxu0 %v1155
        %1282 = vmatprep.subr.bf16.mxu0 %v1154
        %1283 = vmatpush1.bf16.msra.mxu0 %v1153
        %1284 = vmatprep.subr.bf16.mxu0 %v1152
        %1285 = vmatpush1.bf16.msra.mxu0 %v1151
        %1286 = vmatprep.subr.bf16.mxu0 %v1150
        %1287 = vmatpush1.bf16.msra.mxu0 %v1149
        %1288 = vmatprep.subr.bf16.mxu0 %v1148
        %1289 = vmatpush1.bf16.msra.mxu0 %v1147
        %1290 = vmatprep.subr.bf16.mxu0 %v1146
        %1291 = vmatpush1.bf16.msra.mxu0 %v1145
        %1292 = vmatprep.subr.bf16.mxu0 %v1144
        %1293 = vmatpush1.bf16.msra.mxu0 %v1143
        %1294 = vmatprep.subr.bf16.mxu0 %v1174
        %1295 = vmatpush2.bf16.msra.mxu0 %v1173
        %1296 = vmatprep.subr.bf16.mxu0 %v1172
        %1297 = vmatpush2.bf16.msra.mxu0 %v1171
        %1298 = vmatprep.subr.bf16.mxu0 %v1170
        %1299 = vmatpush2.bf16.msra.mxu0 %v1169
        %1300 = vmatprep.subr.bf16.mxu0 %v1168
        %1301 = vmatpush2.bf16.msra.mxu0 %v1167
        %1302 = vmatprep.subr.bf16.mxu0 %v1166
        %1303 = vmatpush2.bf16.msra.mxu0 %v1165
        %1304 = vmatprep.subr.bf16.mxu0 %v1164
        %1305 = vmatpush2.bf16.msra.mxu0 %v1163
        %1306 = vmatprep.subr.bf16.mxu0 %v1162
        %1307 = vmatpush2.bf16.msra.mxu0 %v1161
        %1308 = vmatprep.subr.bf16.mxu0 %v1160
        %1309 = vmatpush2.bf16.msra.mxu0 %v1159
        %1310 = vmatprep.mubr.bf16.mxu0 %v668
        %1311 = vmatmul.mubr.bf16.gmra.mxu0 %v667
        %v1312 = vpop.f32.mrf.mxu0
        %v1313 = vadd.f32 0.0, %v1312
        %v1314 = vpop.f32.mrf.mxu0
        %v1315 = vadd.f32 0.0, %v1314
        %v1316 = vpop.f32.mrf.mxu0
        %v1317 = vadd.f32 0.0, %v1316
        %v1318 = vpop.f32.mrf.mxu0
        %v1319 = vadd.f32 0.0, %v1318
        %1320 = vdwg.mxu0
        %1321 = vmatprep.subr.bf16.mxu0 %v1190
        %1322 = vmatpush1.bf16.msra.mxu0 %v1189
        %1323 = vmatprep.subr.bf16.mxu0 %v1188
        %1324 = vmatpush1.bf16.msra.mxu0 %v1187
        %1325 = vmatprep.subr.bf16.mxu0 %v1186
        %1326 = vmatpush1.bf16.msra.mxu0 %v1185
        %1327 = vmatprep.subr.bf16.mxu0 %v1184
        %1328 = vmatpush1.bf16.msra.mxu0 %v1183
        %1329 = vmatprep.subr.bf16.mxu0 %v1182
        %1330 = vmatpush1.bf16.msra.mxu0 %v1181
        %1331 = vmatprep.subr.bf16.mxu0 %v1180
        %1332 = vmatpush1.bf16.msra.mxu0 %v1179
        %1333 = vmatprep.subr.bf16.mxu0 %v1178
        %1334 = vmatpush1.bf16.msra.mxu0 %v1177
        %1335 = vmatprep.subr.bf16.mxu0 %v1176
        %1336 = vmatpush1.bf16.msra.mxu0 %v1175
        %1337 = vmatprep.subr.bf16.mxu0 %v1206
        %1338 = vmatpush2.bf16.msra.mxu0 %v1205
        %1339 = vmatprep.subr.bf16.mxu0 %v1204
        %1340 = vmatpush2.bf16.msra.mxu0 %v1203
        %1341 = vmatprep.subr.bf16.mxu0 %v1202
        %1342 = vmatpush2.bf16.msra.mxu0 %v1201
        %1343 = vmatprep.subr.bf16.mxu0 %v1200
        %1344 = vmatpush2.bf16.msra.mxu0 %v1199
        %1345 = vmatprep.subr.bf16.mxu0 %v1198
        %1346 = vmatpush2.bf16.msra.mxu0 %v1197
        %1347 = vmatprep.subr.bf16.mxu0 %v1196
        %1348 = vmatpush2.bf16.msra.mxu0 %v1195
        %1349 = vmatprep.subr.bf16.mxu0 %v1194
        %1350 = vmatpush2.bf16.msra.mxu0 %v1193
        %1351 = vmatprep.subr.bf16.mxu0 %v1192
        %1352 = vmatpush2.bf16.msra.mxu0 %v1191
        %1353 = vmatprep.mubr.bf16.mxu0 %v670
        %1354 = vmatmul.mubr.bf16.gmra.mxu0 %v669
        %v1355 = vpop.f32.mrf.mxu0
        %v1356 = vadd.f32 %v1313, %v1355
        %v1357 = vpop.f32.mrf.mxu0
        %v1358 = vadd.f32 %v1315, %v1357
        %v1359 = vpop.f32.mrf.mxu0
        %v1360 = vadd.f32 %v1317, %v1359
        %v1361 = vpop.f32.mrf.mxu0
        %v1362 = vadd.f32 %v1319, %v1361
        %1363 = vdwg.mxu0
        %1364 = vmatprep.subr.bf16.mxu0 0
        %1365 = vmatpush1.bf16.msra.mxu0 0
        %1366 = vmatprep.subr.bf16.mxu0 0
        %1367 = vmatpush1.bf16.msra.mxu0 0
        %1368 = vmatprep.subr.bf16.mxu0 0
        %1369 = vmatpush1.bf16.msra.mxu0 0
        %1370 = vmatprep.subr.bf16.mxu0 0
        %1371 = vmatpush1.bf16.msra.mxu0 0
        %1372 = vmatprep.subr.bf16.mxu0 0
        %1373 = vmatpush1.bf16.msra.mxu0 0
        %1374 = vmatprep.subr.bf16.mxu0 0
        %1375 = vmatpush1.bf16.msra.mxu0 0
        %1376 = vmatprep.subr.bf16.mxu0 0
        %1377 = vmatpush1.bf16.msra.mxu0 0
        %1378 = vmatprep.subr.bf16.mxu0 %v1208
        %1379 = vmatpush1.bf16.msra.mxu0 %v1207
        %1380 = vmatprep.subr.bf16.mxu0 0
        %1381 = vmatpush2.bf16.msra.mxu0 0
        %1382 = vmatprep.subr.bf16.mxu0 0
        %1383 = vmatpush2.bf16.msra.mxu0 0
        %1384 = vmatprep.subr.bf16.mxu0 0
        %1385 = vmatpush2.bf16.msra.mxu0 0
        %1386 = vmatprep.subr.bf16.mxu0 0
        %1387 = vmatpush2.bf16.msra.mxu0 0
        %1388 = vmatprep.subr.bf16.mxu0 0
        %1389 = vmatpush2.bf16.msra.mxu0 0
        %1390 = vmatprep.subr.bf16.mxu0 0
        %1391 = vmatpush2.bf16.msra.mxu0 0
        %1392 = vmatprep.subr.bf16.mxu0 0
        %1393 = vmatpush2.bf16.msra.mxu0 0
        %1394 = vmatprep.subr.bf16.mxu0 0
        %1395 = vmatpush2.bf16.msra.mxu0 0
        %1396 = vmatprep.mubr.bf16.mxu0 0
        %1397 = vmatmul.mubr.bf16.gmra.mxu0 %v1276
        %v1398 = vpop.f32.mrf.mxu0
        %v1399 = vadd.f32 %v1356, %v1398
        %v1400 = vpop.f32.mrf.mxu0
        %v1401 = vadd.f32 %v1358, %v1400
        %v1402 = vpop.f32.mrf.mxu0
        %v1403 = vadd.f32 %v1360, %v1402
        %v1404 = vpop.f32.mrf.mxu0
        %v1405 = vadd.f32 %v1362, %v1404
        %1406 = vdwg.mxu0
        %v1473 = vunpack.c.l.b16 %v813
        %v1474 = vunpack.c.h.b16 %v813
        %v1475 = vunpack.c.l.b16 %v814
        %v1476 = vunpack.c.h.b16 %v814
        %v1477 = vunpack.c.l.b16 %v815
        %v1478 = vunpack.c.h.b16 %v815
        %v1479 = vunpack.c.l.b16 %v816
        %v1480 = vunpack.c.h.b16 %v816
        %v1481 = vunpack.c.l.b16 %v817
        %v1482 = vunpack.c.h.b16 %v817
        %v1483 = vunpack.c.l.b16 %v818
        %v1484 = vunpack.c.h.b16 %v818
        %v1485 = vunpack.c.l.b16 %v819
        %v1486 = vunpack.c.h.b16 %v819
        %v1487 = vunpack.c.l.b16 %v820
        %v1488 = vunpack.c.h.b16 %v820
        %v1489 = vunpack.c.l.b16 %v821
        %v1490 = vunpack.c.h.b16 %v821
        %v1491 = vunpack.c.l.b16 %v822
        %v1492 = vunpack.c.h.b16 %v822
        %v1493 = vunpack.c.l.b16 %v823
        %v1494 = vunpack.c.h.b16 %v823
        %v1495 = vunpack.c.l.b16 %v824
        %v1496 = vunpack.c.h.b16 %v824
        %v1497 = vunpack.c.l.b16 %v825
        %v1498 = vunpack.c.h.b16 %v825
        %v1499 = vunpack.c.l.b16 %v826
        %v1500 = vunpack.c.h.b16 %v826
        %v1501 = vunpack.c.l.b16 %v827
        %v1502 = vunpack.c.h.b16 %v827
        %v1503 = vunpack.c.l.b16 %v828
        %v1504 = vunpack.c.h.b16 %v828
        %v1505 = vunpack.c.l.b16 %v829
        %v1506 = vunpack.c.h.b16 %v829
        %v1507 = vunpack.c.l.b16 %v830
        %v1508 = vunpack.c.h.b16 %v830
        %v1509 = vunpack.c.l.b16 %v831
        %v1510 = vunpack.c.h.b16 %v831
        %v1511 = vunpack.c.l.b16 %v832
        %v1512 = vunpack.c.h.b16 %v832
        %v1513 = vunpack.c.l.b16 %v833
        %v1514 = vunpack.c.h.b16 %v833
        %v1515 = vunpack.c.l.b16 %v834
        %v1516 = vunpack.c.h.b16 %v834
        %v1517 = vunpack.c.l.b16 %v835
        %v1518 = vunpack.c.h.b16 %v835
        %v1519 = vunpack.c.l.b16 %v836
        %v1520 = vunpack.c.h.b16 %v836
        %v1521 = vunpack.c.l.b16 %v837
        %v1522 = vunpack.c.h.b16 %v837
        %v1523 = vunpack.c.l.b16 %v838
        %v1524 = vunpack.c.h.b16 %v838
        %v1525 = vunpack.c.l.b16 %v839
        %v1526 = vunpack.c.h.b16 %v839
        %v1527 = vunpack.c.l.b16 %v840
        %v1528 = vunpack.c.h.b16 %v840
        %v1529 = vunpack.c.l.b16 %v841
        %v1530 = vunpack.c.h.b16 %v841
        %v1531 = vunpack.c.l.b16 %v842
        %v1532 = vunpack.c.h.b16 %v842
        %v1533 = vunpack.c.l.b16 %v843
        %v1534 = vunpack.c.h.b16 %v843
        %v1535 = vunpack.c.l.b16 %v844
        %v1536 = vunpack.c.h.b16 %v844
        %v1537 = vunpack.c.l.b16 %v845
        %v1538 = vunpack.c.h.b16 %v845
        %v1539 = vunpack.c.l.b16 %v846
        %v1540 = vunpack.c.h.b16 %v846
        %v1541 = vunpack.c.l.b16 %v847
        %v1542 = vunpack.c.h.b16 %v847
        %v1543 = vunpack.c.l.b16 %v848
        %v1544 = vunpack.c.h.b16 %v848
        %v1545 = vunpack.c.l.b16 %v849
        %v1546 = vunpack.c.h.b16 %v849
        %v1547 = vunpack.c.l.b16 %v850
        %v1548 = vunpack.c.h.b16 %v850
        %v1549 = vunpack.c.l.b16 %v851
        %v1550 = vunpack.c.h.b16 %v851
        %v1551 = vunpack.c.l.b16 %v852
        %v1552 = vunpack.c.h.b16 %v852
        %v1553 = vunpack.c.l.b16 %v853
        %v1554 = vunpack.c.h.b16 %v853
        %v1555 = vunpack.c.l.b16 %v854
        %v1556 = vunpack.c.h.b16 %v854
        %v1557 = vunpack.c.l.b16 %v855
        %v1558 = vunpack.c.h.b16 %v855
        %v1559 = vunpack.c.l.b16 %v856
        %v1560 = vunpack.c.h.b16 %v856
        %v1561 = vunpack.c.l.b16 %v857
        %v1562 = vunpack.c.h.b16 %v857
        %v1563 = vunpack.c.l.b16 %v858
        %v1564 = vunpack.c.h.b16 %v858
        %v1565 = vunpack.c.l.b16 %v859
        %v1566 = vunpack.c.h.b16 %v859
        %v1567 = vunpack.c.l.b16 %v860
        %v1568 = vunpack.c.h.b16 %v860
        %v1569 = vunpack.c.l.b16 %v861
        %v1570 = vunpack.c.h.b16 %v861
        %v1571 = vunpack.c.l.b16 %v862
        %v1572 = vunpack.c.h.b16 %v862
        %v1573 = vunpack.c.l.b16 %v863
        %v1574 = vunpack.c.h.b16 %v863
        %v1575 = vunpack.c.l.b16 %v864
        %v1576 = vunpack.c.h.b16 %v864
        %v1577 = vunpack.c.l.b16 %v865
        %v1578 = vunpack.c.h.b16 %v865
        %v1579 = vunpack.c.l.b16 %v866
        %v1580 = vunpack.c.h.b16 %v866
        %v1581 = vunpack.c.l.b16 %v867
        %v1582 = vunpack.c.h.b16 %v867
        %v1583 = vunpack.c.l.b16 %v868
        %v1584 = vunpack.c.h.b16 %v868
        %v1585 = vunpack.c.l.b16 %v869
        %v1586 = vunpack.c.h.b16 %v869
        %v1587 = vunpack.c.l.b16 %v870
        %v1588 = vunpack.c.h.b16 %v870
        %v1589 = vunpack.c.l.b16 %v871
        %v1590 = vunpack.c.h.b16 %v871
        %v1591 = vunpack.c.l.b16 %v872
        %v1592 = vunpack.c.h.b16 %v872
        %v1593 = vunpack.c.l.b16 %v873
        %v1594 = vunpack.c.h.b16 %v873
        %v1595 = vunpack.c.l.b16 %v874
        %v1596 = vunpack.c.h.b16 %v874
        %v1597 = vunpack.c.l.b16 %v875
        %v1598 = vunpack.c.h.b16 %v875
        %v1599 = vunpack.c.l.b16 %v876
        %v1600 = vunpack.c.h.b16 %v876
        %v1601 = vunpack.c.l.b16 %v877
        %v1602 = vunpack.c.h.b16 %v877
        %v1603 = vunpack.c.l.b16 %v878
        %v1604 = vunpack.c.h.b16 %v878
        %v1605 = vpack.c.b16 %v1475, %v1473
        %v1606 = vpack.c.b16 %v1476, %v1474
        %v1607 = vpack.c.b16 %v1479, %v1477
        %v1608 = vpack.c.b16 %v1480, %v1478
        %v1609 = vpack.c.b16 %v1483, %v1481
        %v1610 = vpack.c.b16 %v1484, %v1482
        %v1611 = vpack.c.b16 %v1487, %v1485
        %v1612 = vpack.c.b16 %v1488, %v1486
        %v1613 = vpack.c.b16 %v1491, %v1489
        %v1614 = vpack.c.b16 %v1492, %v1490
        %v1615 = vpack.c.b16 %v1495, %v1493
        %v1616 = vpack.c.b16 %v1496, %v1494
        %v1617 = vpack.c.b16 %v1499, %v1497
        %v1618 = vpack.c.b16 %v1500, %v1498
        %v1619 = vpack.c.b16 %v1503, %v1501
        %v1620 = vpack.c.b16 %v1504, %v1502
        %v1621 = vpack.c.b16 %v1507, %v1505
        %v1622 = vpack.c.b16 %v1508, %v1506
        %v1623 = vpack.c.b16 %v1511, %v1509
        %v1624 = vpack.c.b16 %v1512, %v1510
        %v1625 = vpack.c.b16 %v1515, %v1513
        %v1626 = vpack.c.b16 %v1516, %v1514
        %v1627 = vpack.c.b16 %v1519, %v1517
        %v1628 = vpack.c.b16 %v1520, %v1518
        %v1629 = vpack.c.b16 %v1523, %v1521
        %v1630 = vpack.c.b16 %v1524, %v1522
        %v1631 = vpack.c.b16 %v1527, %v1525
        %v1632 = vpack.c.b16 %v1528, %v1526
        %v1633 = vpack.c.b16 %v1531, %v1529
        %v1634 = vpack.c.b16 %v1532, %v1530
        %v1635 = vpack.c.b16 %v1535, %v1533
        %v1636 = vpack.c.b16 %v1536, %v1534
        %v1637 = vpack.c.b16 %v1539, %v1537
        %v1638 = vpack.c.b16 %v1540, %v1538
        %v1639 = vpack.c.b16 %v1543, %v1541
        %v1640 = vpack.c.b16 %v1544, %v1542
        %v1641 = vpack.c.b16 %v1547, %v1545
        %v1642 = vpack.c.b16 %v1548, %v1546
        %v1643 = vpack.c.b16 %v1551, %v1549
        %v1644 = vpack.c.b16 %v1552, %v1550
        %v1645 = vpack.c.b16 %v1555, %v1553
        %v1646 = vpack.c.b16 %v1556, %v1554
        %v1647 = vpack.c.b16 %v1559, %v1557
        %v1648 = vpack.c.b16 %v1560, %v1558
        %v1649 = vpack.c.b16 %v1563, %v1561
        %v1650 = vpack.c.b16 %v1564, %v1562
        %v1651 = vpack.c.b16 %v1567, %v1565
        %v1652 = vpack.c.b16 %v1568, %v1566
        %v1653 = vpack.c.b16 %v1571, %v1569
        %v1654 = vpack.c.b16 %v1572, %v1570
        %v1655 = vpack.c.b16 %v1575, %v1573
        %v1656 = vpack.c.b16 %v1576, %v1574
        %v1657 = vpack.c.b16 %v1579, %v1577
        %v1658 = vpack.c.b16 %v1580, %v1578
        %v1659 = vpack.c.b16 %v1583, %v1581
        %v1660 = vpack.c.b16 %v1584, %v1582
        %v1661 = vpack.c.b16 %v1587, %v1585
        %v1662 = vpack.c.b16 %v1588, %v1586
        %v1663 = vpack.c.b16 %v1591, %v1589
        %v1664 = vpack.c.b16 %v1592, %v1590
        %v1665 = vpack.c.b16 %v1595, %v1593
        %v1666 = vpack.c.b16 %v1596, %v1594
        %v1667 = vpack.c.b16 %v1599, %v1597
        %v1668 = vpack.c.b16 %v1600, %v1598
        %v1669 = vpack.c.b16 %v1603, %v1601
        %v1670 = vpack.c.b16 %v1604, %v1602
        %v1738 = vsel %vm677, %v812, 0
        %1740 = vmatprep.subr.bf16.mxu0 %v1620
        %1741 = vmatpush1.bf16.msra.mxu0 %v1619
        %1742 = vmatprep.subr.bf16.mxu0 %v1618
        %1743 = vmatpush1.bf16.msra.mxu0 %v1617
        %1744 = vmatprep.subr.bf16.mxu0 %v1616
        %1745 = vmatpush1.bf16.msra.mxu0 %v1615
        %1746 = vmatprep.subr.bf16.mxu0 %v1614
        %1747 = vmatpush1.bf16.msra.mxu0 %v1613
        %1748 = vmatprep.subr.bf16.mxu0 %v1612
        %1749 = vmatpush1.bf16.msra.mxu0 %v1611
        %1750 = vmatprep.subr.bf16.mxu0 %v1610
        %1751 = vmatpush1.bf16.msra.mxu0 %v1609
        %1752 = vmatprep.subr.bf16.mxu0 %v1608
        %1753 = vmatpush1.bf16.msra.mxu0 %v1607
        %1754 = vmatprep.subr.bf16.mxu0 %v1606
        %1755 = vmatpush1.bf16.msra.mxu0 %v1605
        %1756 = vmatprep.subr.bf16.mxu0 %v1636
        %1757 = vmatpush2.bf16.msra.mxu0 %v1635
        %1758 = vmatprep.subr.bf16.mxu0 %v1634
        %1759 = vmatpush2.bf16.msra.mxu0 %v1633
        %1760 = vmatprep.subr.bf16.mxu0 %v1632
        %1761 = vmatpush2.bf16.msra.mxu0 %v1631
        %1762 = vmatprep.subr.bf16.mxu0 %v1630
        %1763 = vmatpush2.bf16.msra.mxu0 %v1629
        %1764 = vmatprep.subr.bf16.mxu0 %v1628
        %1765 = vmatpush2.bf16.msra.mxu0 %v1627
        %1766 = vmatprep.subr.bf16.mxu0 %v1626
        %1767 = vmatpush2.bf16.msra.mxu0 %v1625
        %1768 = vmatprep.subr.bf16.mxu0 %v1624
        %1769 = vmatpush2.bf16.msra.mxu0 %v1623
        %1770 = vmatprep.subr.bf16.mxu0 %v1622
        %1771 = vmatpush2.bf16.msra.mxu0 %v1621
        %1772 = vmatprep.mubr.bf16.mxu0 %v809
        %1773 = vmatmul.mubr.bf16.gmra.mxu0 %v808
        %v1774 = vpop.f32.mrf.mxu0
        %v1775 = vadd.f32 %v1399, %v1774
        %v1776 = vpop.f32.mrf.mxu0
        %v1777 = vadd.f32 %v1401, %v1776
        %v1778 = vpop.f32.mrf.mxu0
        %v1779 = vadd.f32 %v1403, %v1778
        %v1780 = vpop.f32.mrf.mxu0
        %v1781 = vadd.f32 %v1405, %v1780
        %1782 = vdwg.mxu0
        %1783 = vmatprep.subr.bf16.mxu0 %v1652
        %1784 = vmatpush1.bf16.msra.mxu0 %v1651
        %1785 = vmatprep.subr.bf16.mxu0 %v1650
        %1786 = vmatpush1.bf16.msra.mxu0 %v1649
        %1787 = vmatprep.subr.bf16.mxu0 %v1648
        %1788 = vmatpush1.bf16.msra.mxu0 %v1647
        %1789 = vmatprep.subr.bf16.mxu0 %v1646
        %1790 = vmatpush1.bf16.msra.mxu0 %v1645
        %1791 = vmatprep.subr.bf16.mxu0 %v1644
        %1792 = vmatpush1.bf16.msra.mxu0 %v1643
        %1793 = vmatprep.subr.bf16.mxu0 %v1642
        %1794 = vmatpush1.bf16.msra.mxu0 %v1641
        %1795 = vmatprep.subr.bf16.mxu0 %v1640
        %1796 = vmatpush1.bf16.msra.mxu0 %v1639
        %1797 = vmatprep.subr.bf16.mxu0 %v1638
        %1798 = vmatpush1.bf16.msra.mxu0 %v1637
        %1799 = vmatprep.subr.bf16.mxu0 %v1668
        %1800 = vmatpush2.bf16.msra.mxu0 %v1667
        %1801 = vmatprep.subr.bf16.mxu0 %v1666
        %1802 = vmatpush2.bf16.msra.mxu0 %v1665
        %1803 = vmatprep.subr.bf16.mxu0 %v1664
        %1804 = vmatpush2.bf16.msra.mxu0 %v1663
        %1805 = vmatprep.subr.bf16.mxu0 %v1662
        %1806 = vmatpush2.bf16.msra.mxu0 %v1661
        %1807 = vmatprep.subr.bf16.mxu0 %v1660
        %1808 = vmatpush2.bf16.msra.mxu0 %v1659
        %1809 = vmatprep.subr.bf16.mxu0 %v1658
        %1810 = vmatpush2.bf16.msra.mxu0 %v1657
        %1811 = vmatprep.subr.bf16.mxu0 %v1656
        %1812 = vmatpush2.bf16.msra.mxu0 %v1655
        %1813 = vmatprep.subr.bf16.mxu0 %v1654
        %1814 = vmatpush2.bf16.msra.mxu0 %v1653
        %1815 = vmatprep.mubr.bf16.mxu0 %v811
        %1816 = vmatmul.mubr.bf16.gmra.mxu0 %v810
        %v1817 = vpop.f32.mrf.mxu0
        %v1818 = vadd.f32 %v1775, %v1817
        %v1819 = vpop.f32.mrf.mxu0
        %v1820 = vadd.f32 %v1777, %v1819
        %v1821 = vpop.f32.mrf.mxu0
        %v1822 = vadd.f32 %v1779, %v1821
        %v1823 = vpop.f32.mrf.mxu0
        %v1824 = vadd.f32 %v1781, %v1823
        %1825 = vdwg.mxu0
        %1826 = vmatprep.subr.bf16.mxu0 0
        %1827 = vmatpush1.bf16.msra.mxu0 0
        %1828 = vmatprep.subr.bf16.mxu0 0
        %1829 = vmatpush1.bf16.msra.mxu0 0
        %1830 = vmatprep.subr.bf16.mxu0 0
        %1831 = vmatpush1.bf16.msra.mxu0 0
        %1832 = vmatprep.subr.bf16.mxu0 0
        %1833 = vmatpush1.bf16.msra.mxu0 0
        %1834 = vmatprep.subr.bf16.mxu0 0
        %1835 = vmatpush1.bf16.msra.mxu0 0
        %1836 = vmatprep.subr.bf16.mxu0 0
        %1837 = vmatpush1.bf16.msra.mxu0 0
        %1838 = vmatprep.subr.bf16.mxu0 0
        %1839 = vmatpush1.bf16.msra.mxu0 0
        %1840 = vmatprep.subr.bf16.mxu0 %v1670
        %1841 = vmatpush1.bf16.msra.mxu0 %v1669
        %1842 = vmatprep.subr.bf16.mxu0 0
        %1843 = vmatpush2.bf16.msra.mxu0 0
        %1844 = vmatprep.subr.bf16.mxu0 0
        %1845 = vmatpush2.bf16.msra.mxu0 0
        %1846 = vmatprep.subr.bf16.mxu0 0
        %1847 = vmatpush2.bf16.msra.mxu0 0
        %1848 = vmatprep.subr.bf16.mxu0 0
        %1849 = vmatpush2.bf16.msra.mxu0 0
        %1850 = vmatprep.subr.bf16.mxu0 0
        %1851 = vmatpush2.bf16.msra.mxu0 0
        %1852 = vmatprep.subr.bf16.mxu0 0
        %1853 = vmatpush2.bf16.msra.mxu0 0
        %1854 = vmatprep.subr.bf16.mxu0 0
        %1855 = vmatpush2.bf16.msra.mxu0 0
        %1856 = vmatprep.subr.bf16.mxu0 0
        %1857 = vmatpush2.bf16.msra.mxu0 0
        %1858 = vmatprep.mubr.bf16.mxu0 0
        %1859 = vmatmul.mubr.bf16.gmra.mxu0 %v1738
        %v1860 = vpop.f32.mrf.mxu0
        %v1861 = vadd.f32 %v1818, %v1860
        %v1862 = vpop.f32.mrf.mxu0
        %v1863 = vadd.f32 %v1820, %v1862
        %v1864 = vpop.f32.mrf.mxu0
        %v1865 = vadd.f32 %v1822, %v1864
        %v1866 = vpop.f32.mrf.mxu0
        %v1867 = vadd.f32 %v1824, %v1866
        %1868 = vdwg.mxu0
        %v1869 = vld [vmem:[%s6] sm:$0x3]
        %v1870 = vld [vmem:[%s7] sm:$0x3]
        %v1871 = vadd.f32 %v1861, %v1865
        %v1872 = vrot.slane %v1871, 4
        %v1873 = vadd.f32 %v1871, %v1872
        %v1874 = vrot.slane %v1873, 2
        %v1875 = vadd.f32 %v1873, %v1874
        %v1876 = vrot.slane %v1875, 1
        %v1877 = vadd.f32 %v1875, %v1876
        %v1878 = vadd.f32 %v1863, %v1867
        %v1879 = vrot.slane %v1878, 4
        %v1880 = vadd.f32 %v1878, %v1879
        %v1881 = vrot.slane %v1880, 2
        %v1882 = vadd.f32 %v1880, %v1881
        %v1883 = vrot.slane %v1882, 1
        %v1884 = vadd.f32 %v1882, %v1883
        %v1885 = vrcp.pop 16.0
        %v1886 = vmul.f32 %v1877, %v1885
        %v1887 = vmul.f32 %v1884, %v1885
        %v1888 = vmul.f32 %v1861, %v1861
        %v1889 = vmul.f32 %v1863, %v1863
        %v1890 = vmul.f32 %v1865, %v1865
        %v1891 = vmul.f32 %v1867, %v1867
        %v1892 = vadd.f32 %v1888, %v1890
        %v1893 = vrot.slane %v1892, 4
        %v1894 = vadd.f32 %v1892, %v1893
        %v1895 = vrot.slane %v1894, 2
        %v1896 = vadd.f32 %v1894, %v1895
        %v1897 = vrot.slane %v1896, 1
        %v1898 = vadd.f32 %v1896, %v1897
        %v1899 = vadd.f32 %v1889, %v1891
        %v1900 = vrot.slane %v1899, 4
        %v1901 = vadd.f32 %v1899, %v1900
        %v1902 = vrot.slane %v1901, 2
        %v1903 = vadd.f32 %v1901, %v1902
        %v1904 = vrot.slane %v1903, 1
        %v1905 = vadd.f32 %v1903, %v1904
        %v1906 = vmul.f32 %v1898, %v1885
        %v1907 = vmul.f32 %v1905, %v1885
        %v1908 = vmul.f32 %v1886, %v1886
        %v1909 = vmul.f32 %v1887, %v1887
        %v1910 = vsub.f32 %v1906, %v1908
        %v1911 = vsub.f32 %v1907, %v1909
        %v1912 = vmax.f32 %v1910, 0.0
        %v1913 = vmax.f32 %v1911, 0.0
        %v1914 = vadd.f32 %v1912, 1e-05
        %v1915 = vadd.f32 %v1913, 1e-05
        %v1916 = vrsqrt.pop %v1914
        %v1917 = vrsqrt.pop %v1915
        %v1920 = vcombine.low %v1916, %v1917
        %v1922 = vunpack.c.l.s4 1966171168
        %v1923 = vunpack.c.0.s8 %v1922
        %v1924 = vlaneseq
        %v1925 = vshrl.u32 %v1924, 7
        %v1926 = vsub.s32 %v1923, %v1925
        %v1927 = vrot.slane %v1920, %v1926
        %v1929 = vunpack.c.l.s4 1966171168
        %v1930 = vunpack.c.0.s8 %v1929
        %v1931 = vlaneseq
        %v1932 = vshrl.u32 %v1931, 7
        %v1933 = vsub.s32 %v1930, %v1932
        %v1934 = vrot.slane %v1927, %v1933
        %v1936 = vmul.f32 %v1869, %v1934
        %v1938 = vlaneseq
        %v1939 = vshrl.u32 %v1938, 7
        %v1940 = vsub.s32 0, %v1939
        %v1941 = vrot.slane %v1936, %v1940
        %v1942 = vlaneseq
        %v1943 = vshrl.u32 %v1942, 7
        %v1944 = vsub.s32 1, %v1943
        %v1945 = vrot.slane %v1936, %v1944
        %v1948 = vmul.f32 %v1886, %v1941
        %v1949 = vmul.f32 %v1887, %v1945
        %v1952 = vcombine.low %v1948, %v1949
        %v1954 = vunpack.c.l.s4 1966171168
        %v1955 = vunpack.c.0.s8 %v1954
        %v1956 = vlaneseq
        %v1957 = vshrl.u32 %v1956, 7
        %v1958 = vsub.s32 %v1955, %v1957
        %v1959 = vrot.slane %v1952, %v1958
        %v1961 = vunpack.c.l.s4 1966171168
        %v1962 = vunpack.c.0.s8 %v1961
        %v1963 = vlaneseq
        %v1964 = vshrl.u32 %v1963, 7
        %v1965 = vsub.s32 %v1962, %v1964
        %v1966 = vrot.slane %v1959, %v1965
        %v1968 = vsub.f32 %v1870, %v1966
        %v1969 = vmul.f32 %v1861, %v1941
        %v1970 = vmul.f32 %v1863, %v1945
        %v1971 = vmul.f32 %v1865, %v1941
        %v1972 = vmul.f32 %v1867, %v1945
        %v1974 = vlaneseq
        %v1975 = vshrl.u32 %v1974, 7
        %v1976 = vsub.s32 0, %v1975
        %v1977 = vrot.slane %v1968, %v1976
        %v1978 = vlaneseq
        %v1979 = vshrl.u32 %v1978, 7
        %v1980 = vsub.s32 1, %v1979
        %v1981 = vrot.slane %v1968, %v1980
        %v1984 = vadd.f32 %v1969, %v1977
        %v1985 = vadd.f32 %v1970, %v1981
        %v1986 = vadd.f32 %v1971, %v1977
        %v1987 = vadd.f32 %v1972, %v1981
        %v1988 = vmax.f32 %v1984, 0.0
        %v1989 = vmax.f32 %v1985, 0.0
        %v1990 = vmax.f32 %v1986, 0.0
        %v1991 = vmax.f32 %v1987, 0.0
        %v1992 = vld [vmem:[%s8] sm:$0xf]
        %v1993 = vld [vmem:[%s8 + $0x4] sm:$0xf]
        %v1994 = vld [vmem:[%s8 + $0x8] sm:$0xf]
        %v1995 = vld [vmem:[%s8 + $0xc] sm:$0xf]
        %v1996 = vld [vmem:[%s8 + $0x10] sm:$0xf]
        %v1997 = vld [vmem:[%s8 + $0x14] sm:$0xf]
        %v1998 = vld [vmem:[%s8 + $0x18] sm:$0xf]
        %v1999 = vld [vmem:[%s8 + $0x1c] sm:$0xf]
        %v2000 = vld [vmem:[%s8 + $0x20] sm:$0xf]
        %v2001 = vld [vmem:[%s8 + $0x24] sm:$0xf]
        %v2002 = vld [vmem:[%s8 + $0x28] sm:$0xf]
        %v2003 = vld [vmem:[%s8 + $0x2c] sm:$0xf]
        %v2004 = vld [vmem:[%s8 + $0x30] sm:$0xf]
        %v2005 = vld [vmem:[%s8 + $0x34] sm:$0xf]
        %v2006 = vld [vmem:[%s8 + $0x38] sm:$0xf]
        %v2007 = vld [vmem:[%s8 + $0x3c] sm:$0xf]
        %v2008 = vld [vmem:[%s8 + $0x40] sm:$0xf]
        %v2009 = vld [vmem:[%s8 + $0x44] sm:$0xf]
        %v2010 = vld [vmem:[%s8 + $0x48] sm:$0xf]
        %v2011 = vld [vmem:[%s8 + $0x4c] sm:$0xf]
        %v2012 = vld [vmem:[%s8 + $0x50] sm:$0xf]
        %v2013 = vld [vmem:[%s8 + $0x54] sm:$0xf]
        %v2014 = vld [vmem:[%s8 + $0x58] sm:$0xf]
        %v2015 = vld [vmem:[%s8 + $0x5c] sm:$0xf]
        %v2016 = vld [vmem:[%s8 + $0x60] sm:$0xf]
        %v2017 = vld [vmem:[%s8 + $0x64] sm:$0xf]
        %v2018 = vld [vmem:[%s8 + $0x68] sm:$0xf]
        %v2019 = vld [vmem:[%s8 + $0x6c] sm:$0xf]
        %v2020 = vld [vmem:[%s8 + $0x70] sm:$0xf]
        %v2021 = vld [vmem:[%s8 + $0x74] sm:$0xf]
        %v2022 = vld [vmem:[%s8 + $0x78] sm:$0xf]
        %v2023 = vld [vmem:[%s8 + $0x7c] sm:$0xf]
        %v2024 = vld [vmem:[%s8 + $0x80] sm:$0xf]
        %v2025 = vld [vmem:[%s8 + $0x84] sm:$0xf]
        %v2026 = vld [vmem:[%s8 + $0x88] sm:$0xf]
        %v2027 = vld [vmem:[%s8 + $0x8c] sm:$0xf]
        %v2028 = vld [vmem:[%s8 + $0x90] sm:$0xf]
        %v2029 = vld [vmem:[%s8 + $0x94] sm:$0xf]
        %v2030 = vld [vmem:[%s8 + $0x98] sm:$0xf]
        %v2031 = vld [vmem:[%s8 + $0x9c] sm:$0xf]
        %v2032 = vld [vmem:[%s8 + $0xa0] sm:$0xf]
        %v2033 = vld [vmem:[%s8 + $0xa4] sm:$0xf]
        %v2034 = vld [vmem:[%s8 + $0xa8] sm:$0xf]
        %v2035 = vld [vmem:[%s8 + $0xac] sm:$0xf]
        %v2036 = vld [vmem:[%s8 + $0xb0] sm:$0xf]
        %v2037 = vld [vmem:[%s8 + $0xb4] sm:$0xf]
        %v2038 = vld [vmem:[%s8 + $0xb8] sm:$0xf]
        %v2039 = vld [vmem:[%s8 + $0xbc] sm:$0xf]
        %v2040 = vld [vmem:[%s8 + $0xc0] sm:$0xf]
        %v2041 = vld [vmem:[%s8 + $0xc4] sm:$0xf]
        %v2042 = vld [vmem:[%s8 + $0xc8] sm:$0xf]
        %v2043 = vld [vmem:[%s8 + $0xcc] sm:$0xf]
        %v2044 = vld [vmem:[%s8 + $0xd0] sm:$0xf]
        %v2045 = vld [vmem:[%s8 + $0xd4] sm:$0xf]
        %v2046 = vld [vmem:[%s8 + $0xd8] sm:$0xf]
        %v2047 = vld [vmem:[%s8 + $0xdc] sm:$0xf]
        %v2048 = vld [vmem:[%s8 + $0xe0] sm:$0xf]
        %v2049 = vld [vmem:[%s8 + $0xe4] sm:$0xf]
        %v2050 = vld [vmem:[%s8 + $0xe8] sm:$0xf]
        %v2051 = vld [vmem:[%s8 + $0xec] sm:$0xf]
        %v2052 = vld [vmem:[%s8 + $0xf0] sm:$0xf]
        %v2053 = vld [vmem:[%s8 + $0xf4] sm:$0xf]
        %v2054 = vld [vmem:[%s8 + $0xf8] sm:$0xf]
        %v2055 = vld [vmem:[%s8 + $0xfc] sm:$0xf]
        %v2056 = vld [vmem:[%s9] sm:$0x1]
        %v2057 = vld [vmem:[%s10] sm:$0x1]
        %v2058 = vpack.c.bf16 %v1990, %v1988
        %v2059 = vpack.c.bf16 %v1991, %v1989
        %2060 = vmatprep.subr.bf16.mxu0 0
        %2061 = vmatpush1.bf16.msra.mxu0 0
        %2062 = vmatprep.subr.bf16.mxu0 0
        %2063 = vmatpush1.bf16.msra.mxu0 0
        %2064 = vmatprep.subr.bf16.mxu0 0
        %2065 = vmatpush1.bf16.msra.mxu0 0
        %2066 = vmatprep.subr.bf16.mxu0 0
        %2067 = vmatpush1.bf16.msra.mxu0 0
        %2068 = vmatprep.subr.bf16.mxu0 0
        %2069 = vmatpush1.bf16.msra.mxu0 0
        %2070 = vmatprep.subr.bf16.mxu0 0
        %2071 = vmatpush1.bf16.msra.mxu0 0
        %2072 = vmatprep.subr.bf16.mxu0 0
        %2073 = vmatpush1.bf16.msra.mxu0 0
        %2074 = vmatprep.subr.bf16.mxu0 %v2059
        %2075 = vmatpush1.bf16.msra.mxu0 %v2058
        %2076 = vmatprep.subr.bf16.mxu0 0
        %2077 = vmatpush2.bf16.msra.mxu0 0
        %2078 = vmatprep.subr.bf16.mxu0 0
        %2079 = vmatpush2.bf16.msra.mxu0 0
        %2080 = vmatprep.subr.bf16.mxu0 0
        %2081 = vmatpush2.bf16.msra.mxu0 0
        %2082 = vmatprep.subr.bf16.mxu0 0
        %2083 = vmatpush2.bf16.msra.mxu0 0
        %2084 = vmatprep.subr.bf16.mxu0 0
        %2085 = vmatpush2.bf16.msra.mxu0 0
        %2086 = vmatprep.subr.bf16.mxu0 0
        %2087 = vmatpush2.bf16.msra.mxu0 0
        %2088 = vmatprep.subr.bf16.mxu0 0
        %2089 = vmatpush2.bf16.msra.mxu0 0
        %2090 = vmatprep.subr.bf16.mxu0 0
        %2091 = vmatpush2.bf16.msra.mxu0 0
        %2092 = vmatprep.mubr.bf16.mxu0 0
        %2093 = vmatmul.mubr.bf16.gmra.mxu0 %v679
        %v2094 = vpop.f32.mrf.mxu0
        %v2095 = vadd.f32 0.0, %v2094
        %v2096 = vpop.f32.mrf.mxu0
        %v2097 = vadd.f32 0.0, %v2096
        %v2098 = vpop.f32.mrf.mxu0
        %v2099 = vadd.f32 0.0, %v2098
        %v2100 = vpop.f32.mrf.mxu0
        %v2101 = vadd.f32 0.0, %v2100
        %2102 = vdwg.mxu0
        %v2103 = vpack.c.bf16 %v2099, %v2095
        %v2104 = vpack.c.bf16 %v2101, %v2097
        %v2169 = vunpack.c.l.b16 %v1992
        %v2170 = vunpack.c.l.b16 %v1993
        %v2171 = vunpack.c.l.b16 %v1994
        %v2172 = vunpack.c.l.b16 %v1995
        %v2173 = vunpack.c.l.b16 %v1996
        %v2174 = vunpack.c.l.b16 %v1997
        %v2175 = vunpack.c.l.b16 %v1998
        %v2176 = vunpack.c.l.b16 %v1999
        %v2177 = vunpack.c.l.b16 %v2000
        %v2178 = vunpack.c.l.b16 %v2001
        %v2179 = vunpack.c.l.b16 %v2002
        %v2180 = vunpack.c.l.b16 %v2003
        %v2181 = vunpack.c.l.b16 %v2004
        %v2182 = vunpack.c.l.b16 %v2005
        %v2183 = vunpack.c.l.b16 %v2006
        %v2184 = vunpack.c.l.b16 %v2007
        %v2185 = vunpack.c.l.b16 %v2008
        %v2186 = vunpack.c.l.b16 %v2009
        %v2187 = vunpack.c.l.b16 %v2010
        %v2188 = vunpack.c.l.b16 %v2011
        %v2189 = vunpack.c.l.b16 %v2012
        %v2190 = vunpack.c.l.b16 %v2013
        %v2191 = vunpack.c.l.b16 %v2014
        %v2192 = vunpack.c.l.b16 %v2015
        %v2193 = vunpack.c.l.b16 %v2016
        %v2194 = vunpack.c.l.b16 %v2017
        %v2195 = vunpack.c.l.b16 %v2018
        %v2196 = vunpack.c.l.b16 %v2019
        %v2197 = vunpack.c.l.b16 %v2020
        %v2198 = vunpack.c.l.b16 %v2021
        %v2199 = vunpack.c.l.b16 %v2022
        %v2200 = vunpack.c.l.b16 %v2023
        %v2201 = vunpack.c.l.b16 %v2024
        %v2202 = vunpack.c.l.b16 %v2025
        %v2203 = vunpack.c.l.b16 %v2026
        %v2204 = vunpack.c.l.b16 %v2027
        %v2205 = vunpack.c.l.b16 %v2028
        %v2206 = vunpack.c.l.b16 %v2029
        %v2207 = vunpack.c.l.b16 %v2030
        %v2208 = vunpack.c.l.b16 %v2031
        %v2209 = vunpack.c.l.b16 %v2032
        %v2210 = vunpack.c.l.b16 %v2033
        %v2211 = vunpack.c.l.b16 %v2034
        %v2212 = vunpack.c.l.b16 %v2035
        %v2213 = vunpack.c.l.b16 %v2036
        %v2214 = vunpack.c.l.b16 %v2037
        %v2215 = vunpack.c.l.b16 %v2038
        %v2216 = vunpack.c.l.b16 %v2039
        %v2217 = vunpack.c.l.b16 %v2040
        %v2218 = vunpack.c.l.b16 %v2041
        %v2219 = vunpack.c.l.b16 %v2042
        %v2220 = vunpack.c.l.b16 %v2043
        %v2221 = vunpack.c.l.b16 %v2044
        %v2222 = vunpack.c.l.b16 %v2045
        %v2223 = vunpack.c.l.b16 %v2046
        %v2224 = vunpack.c.l.b16 %v2047
        %v2225 = vunpack.c.l.b16 %v2048
        %v2226 = vunpack.c.l.b16 %v2049
        %v2227 = vunpack.c.l.b16 %v2050
        %v2228 = vunpack.c.l.b16 %v2051
        %v2229 = vunpack.c.l.b16 %v2052
        %v2230 = vunpack.c.l.b16 %v2053
        %v2231 = vunpack.c.l.b16 %v2054
        %v2232 = vunpack.c.l.b16 %v2055
        %v2233 = vpack.c.b16 %v2170, %v2169
        %v2234 = vpack.c.b16 %v2172, %v2171
        %v2235 = vpack.c.b16 %v2174, %v2173
        %v2236 = vpack.c.b16 %v2176, %v2175
        %v2237 = vpack.c.b16 %v2178, %v2177
        %v2238 = vpack.c.b16 %v2180, %v2179
        %v2239 = vpack.c.b16 %v2182, %v2181
        %v2240 = vpack.c.b16 %v2184, %v2183
        %v2241 = vpack.c.b16 %v2186, %v2185
        %v2242 = vpack.c.b16 %v2188, %v2187
        %v2243 = vpack.c.b16 %v2190, %v2189
        %v2244 = vpack.c.b16 %v2192, %v2191
        %v2245 = vpack.c.b16 %v2194, %v2193
        %v2246 = vpack.c.b16 %v2196, %v2195
        %v2247 = vpack.c.b16 %v2198, %v2197
        %v2248 = vpack.c.b16 %v2200, %v2199
        %v2249 = vpack.c.b16 %v2202, %v2201
        %v2250 = vpack.c.b16 %v2204, %v2203
        %v2251 = vpack.c.b16 %v2206, %v2205
        %v2252 = vpack.c.b16 %v2208, %v2207
        %v2253 = vpack.c.b16 %v2210, %v2209
        %v2254 = vpack.c.b16 %v2212, %v2211
        %v2255 = vpack.c.b16 %v2214, %v2213
        %v2256 = vpack.c.b16 %v2216, %v2215
        %v2257 = vpack.c.b16 %v2218, %v2217
        %v2258 = vpack.c.b16 %v2220, %v2219
        %v2259 = vpack.c.b16 %v2222, %v2221
        %v2260 = vpack.c.b16 %v2224, %v2223
        %v2261 = vpack.c.b16 %v2226, %v2225
        %v2262 = vpack.c.b16 %v2228, %v2227
        %v2263 = vpack.c.b16 %v2230, %v2229
        %v2264 = vpack.c.b16 %v2232, %v2231
        %2297 = vmatprep.subr.bf16.mxu0 0
        %2298 = vmatpush1.bf16.msra.mxu0 %v2240
        %2299 = vmatprep.subr.bf16.mxu0 0
        %2300 = vmatpush1.bf16.msra.mxu0 %v2239
        %2301 = vmatprep.subr.bf16.mxu0 0
        %2302 = vmatpush1.bf16.msra.mxu0 %v2238
        %2303 = vmatprep.subr.bf16.mxu0 0
        %2304 = vmatpush1.bf16.msra.mxu0 %v2237
        %2305 = vmatprep.subr.bf16.mxu0 0
        %2306 = vmatpush1.bf16.msra.mxu0 %v2236
        %2307 = vmatprep.subr.bf16.mxu0 0
        %2308 = vmatpush1.bf16.msra.mxu0 %v2235
        %2309 = vmatprep.subr.bf16.mxu0 0
        %2310 = vmatpush1.bf16.msra.mxu0 %v2234
        %2311 = vmatprep.subr.bf16.mxu0 0
        %2312 = vmatpush1.bf16.msra.mxu0 %v2233
        %2313 = vmatprep.subr.bf16.mxu0 0
        %2314 = vmatpush2.bf16.msra.mxu0 %v2248
        %2315 = vmatprep.subr.bf16.mxu0 0
        %2316 = vmatpush2.bf16.msra.mxu0 %v2247
        %2317 = vmatprep.subr.bf16.mxu0 0
        %2318 = vmatpush2.bf16.msra.mxu0 %v2246
        %2319 = vmatprep.subr.bf16.mxu0 0
        %2320 = vmatpush2.bf16.msra.mxu0 %v2245
        %2321 = vmatprep.subr.bf16.mxu0 0
        %2322 = vmatpush2.bf16.msra.mxu0 %v2244
        %2323 = vmatprep.subr.bf16.mxu0 0
        %2324 = vmatpush2.bf16.msra.mxu0 %v2243
        %2325 = vmatprep.subr.bf16.mxu0 0
        %2326 = vmatpush2.bf16.msra.mxu0 %v2242
        %2327 = vmatprep.subr.bf16.mxu0 0
        %2328 = vmatpush2.bf16.msra.mxu0 %v2241
        %2329 = vmatprep.mubr.bf16.mxu0 %v2104
        %2330 = vmatmul.mubr.bf16.gmra.mxu0 %v2103
        %v2331 = vpop.f32.mrf.mxu0
        %v2332 = vadd.f32 0.0, %v2331
        %v2333 = vpop.f32.mrf.mxu0
        %v2334 = vpop.f32.mrf.mxu0
        %v2335 = vadd.f32 0.0, %v2334
        %v2336 = vpop.f32.mrf.mxu0
        %2337 = vdwg.mxu0
        %2338 = vmatprep.subr.bf16.mxu0 0
        %2339 = vmatpush1.bf16.msra.mxu0 %v2256
        %2340 = vmatprep.subr.bf16.mxu0 0
        %2341 = vmatpush1.bf16.msra.mxu0 %v2255
        %2342 = vmatprep.subr.bf16.mxu0 0
        %2343 = vmatpush1.bf16.msra.mxu0 %v2254
        %2344 = vmatprep.subr.bf16.mxu0 0
        %2345 = vmatpush1.bf16.msra.mxu0 %v2253
        %2346 = vmatprep.subr.bf16.mxu0 0
        %2347 = vmatpush1.bf16.msra.mxu0 %v2252
        %2348 = vmatprep.subr.bf16.mxu0 0
        %2349 = vmatpush1.bf16.msra.mxu0 %v2251
        %2350 = vmatprep.subr.bf16.mxu0 0
        %2351 = vmatpush1.bf16.msra.mxu0 %v2250
        %2352 = vmatprep.subr.bf16.mxu0 0
        %2353 = vmatpush1.bf16.msra.mxu0 %v2249
        %2354 = vmatprep.subr.bf16.mxu0 0
        %2355 = vmatpush2.bf16.msra.mxu0 %v2264
        %2356 = vmatprep.subr.bf16.mxu0 0
        %2357 = vmatpush2.bf16.msra.mxu0 %v2263
        %2358 = vmatprep.subr.bf16.mxu0 0
        %2359 = vmatpush2.bf16.msra.mxu0 %v2262
        %2360 = vmatprep.subr.bf16.mxu0 0
        %2361 = vmatpush2.bf16.msra.mxu0 %v2261
        %2362 = vmatprep.subr.bf16.mxu0 0
        %2363 = vmatpush2.bf16.msra.mxu0 %v2260
        %2364 = vmatprep.subr.bf16.mxu0 0
        %2365 = vmatpush2.bf16.msra.mxu0 %v2259
        %2366 = vmatprep.subr.bf16.mxu0 0
        %2367 = vmatpush2.bf16.msra.mxu0 %v2258
        %2368 = vmatprep.subr.bf16.mxu0 0
        %2369 = vmatpush2.bf16.msra.mxu0 %v2257
        %2370 = vmatprep.mubr.bf16.mxu0 %v2059
        %2371 = vmatmul.mubr.bf16.gmra.mxu0 %v2058
        %v2372 = vpop.f32.mrf.mxu0
        %v2373 = vadd.f32 %v2332, %v2372
        %v2374 = vpop.f32.mrf.mxu0
        %v2375 = vpop.f32.mrf.mxu0
        %v2376 = vadd.f32 %v2335, %v2375
        %v2377 = vpop.f32.mrf.mxu0
        %2378 = vdwg.mxu0
        %v2379 = vadd.f32 %v2373, %v2376
        %v2380 = vrot.slane %v2379, 4
        %v2381 = vadd.f32 %v2379, %v2380
        %v2382 = vrot.slane %v2381, 2
        %v2383 = vadd.f32 %v2381, %v2382
        %v2384 = vrot.slane %v2383, 1
        %v2385 = vadd.f32 %v2383, %v2384
        %v2386 = vmul.f32 %v2385, %v1885
        %v2387 = vmul.f32 %v2373, %v2373
        %v2388 = vmul.f32 %v2376, %v2376
        %v2389 = vadd.f32 %v2387, %v2388
        %v2390 = vrot.slane %v2389, 4
        %v2391 = vadd.f32 %v2389, %v2390
        %v2392 = vrot.slane %v2391, 2
        %v2393 = vadd.f32 %v2391, %v2392
        %v2394 = vrot.slane %v2393, 1
        %v2395 = vadd.f32 %v2393, %v2394
        %v2396 = vmul.f32 %v2395, %v1885
        %v2397 = vmul.f32 %v2386, %v2386
        %v2398 = vsub.f32 %v2396, %v2397
        %v2399 = vmax.f32 %v2398, 0.0
        %v2400 = vadd.f32 %v2399, 1e-05
        %v2401 = vrsqrt.pop %v2400
        %v2402 = vmul.f32 %v2056, %v2401
        %v2403 = vmul.f32 %v2386, %v2402
        %v2404 = vsub.f32 %v2057, %v2403
        %v2406 = vlaneseq
        %v2407 = vshrl.u32 %v2406, 7
        %v2408 = vsub.s32 0, %v2407
        %v2409 = vrot.slane %v2402, %v2408
        %v2411 = vmul.f32 %v2373, %v2409
        %v2412 = vmul.f32 %v2376, %v2409
        %v2414 = vlaneseq
        %v2415 = vshrl.u32 %v2414, 7
        %v2416 = vsub.s32 0, %v2415
        %v2417 = vrot.slane %v2404, %v2416
        %v2419 = vadd.f32 %v2411, %v2417
        %v2420 = vadd.f32 %v2412, %v2417
        %v2421 = vmax.f32 %v2419, 0.0
        %v2422 = vmax.f32 %v2420, 0.0
        %v2423 = vld [vmem:[%s11] sm:$0xf]
        %v2424 = vld [vmem:[%s11 + $0x4] sm:$0xf]
        %v2425 = vld [vmem:[%s11 + $0x8] sm:$0xf]
        %v2426 = vld [vmem:[%s11 + $0xc] sm:$0xf]
        %v2427 = vld [vmem:[%s11 + $0x10] sm:$0xf]
        %v2428 = vld [vmem:[%s11 + $0x14] sm:$0xf]
        %v2429 = vld [vmem:[%s11 + $0x18] sm:$0xf]
        %v2430 = vld [vmem:[%s11 + $0x1c] sm:$0xf]
        %v2431 = vld [vmem:[%s11 + $0x20] sm:$0xf]
        %v2432 = vld [vmem:[%s11 + $0x24] sm:$0xf]
        %v2433 = vld [vmem:[%s11 + $0x28] sm:$0xf]
        %v2434 = vld [vmem:[%s11 + $0x2c] sm:$0xf]
        %v2435 = vld [vmem:[%s11 + $0x30] sm:$0xf]
        %v2436 = vld [vmem:[%s11 + $0x34] sm:$0xf]
        %v2437 = vld [vmem:[%s11 + $0x38] sm:$0xf]
        %v2438 = vld [vmem:[%s11 + $0x3c] sm:$0xf]
        %v2439 = vld [vmem:[%s11 + $0x40] sm:$0xf]
        %v2440 = vld [vmem:[%s11 + $0x44] sm:$0xf]
        %v2441 = vld [vmem:[%s11 + $0x48] sm:$0xf]
        %v2442 = vld [vmem:[%s11 + $0x4c] sm:$0xf]
        %v2443 = vld [vmem:[%s11 + $0x50] sm:$0xf]
        %v2444 = vld [vmem:[%s11 + $0x54] sm:$0xf]
        %v2445 = vld [vmem:[%s11 + $0x58] sm:$0xf]
        %v2446 = vld [vmem:[%s11 + $0x5c] sm:$0xf]
        %v2447 = vld [vmem:[%s11 + $0x60] sm:$0xf]
        %v2448 = vld [vmem:[%s11 + $0x64] sm:$0xf]
        %v2449 = vld [vmem:[%s11 + $0x68] sm:$0xf]
        %v2450 = vld [vmem:[%s11 + $0x6c] sm:$0xf]
        %v2451 = vld [vmem:[%s11 + $0x70] sm:$0xf]
        %v2452 = vld [vmem:[%s11 + $0x74] sm:$0xf]
        %v2453 = vld [vmem:[%s11 + $0x78] sm:$0xf]
        %v2454 = vld [vmem:[%s11 + $0x7c] sm:$0xf]
        %v2455 = vld [vmem:[%s12] sm:$0x1]
        %v2456 = vld [vmem:[%s13] sm:$0x1]
        %v2457 = vpack.c.bf16 %v2422, %v2421
        %2458 = vmatprep.subr.bf16.mxu0 0
        %2459 = vmatpush1.bf16.msra.mxu0 0
        %2460 = vmatprep.subr.bf16.mxu0 0
        %2461 = vmatpush1.bf16.msra.mxu0 0
        %2462 = vmatprep.subr.bf16.mxu0 0
        %2463 = vmatpush1.bf16.msra.mxu0 0
        %2464 = vmatprep.subr.bf16.mxu0 0
        %2465 = vmatpush1.bf16.msra.mxu0 0
        %2466 = vmatprep.subr.bf16.mxu0 0
        %2467 = vmatpush1.bf16.msra.mxu0 0
        %2468 = vmatprep.subr.bf16.mxu0 0
        %2469 = vmatpush1.bf16.msra.mxu0 0
        %2470 = vmatprep.subr.bf16.mxu0 0
        %2471 = vmatpush1.bf16.msra.mxu0 0
        %2472 = vmatprep.subr.bf16.mxu0 0
        %2473 = vmatpush1.bf16.msra.mxu0 %v2457
        %2474 = vmatprep.subr.bf16.mxu0 0
        %2475 = vmatpush2.bf16.msra.mxu0 0
        %2476 = vmatprep.subr.bf16.mxu0 0
        %2477 = vmatpush2.bf16.msra.mxu0 0
        %2478 = vmatprep.subr.bf16.mxu0 0
        %2479 = vmatpush2.bf16.msra.mxu0 0
        %2480 = vmatprep.subr.bf16.mxu0 0
        %2481 = vmatpush2.bf16.msra.mxu0 0
        %2482 = vmatprep.subr.bf16.mxu0 0
        %2483 = vmatpush2.bf16.msra.mxu0 0
        %2484 = vmatprep.subr.bf16.mxu0 0
        %2485 = vmatpush2.bf16.msra.mxu0 0
        %2486 = vmatprep.subr.bf16.mxu0 0
        %2487 = vmatpush2.bf16.msra.mxu0 0
        %2488 = vmatprep.subr.bf16.mxu0 0
        %2489 = vmatpush2.bf16.msra.mxu0 0
        %2490 = vmatprep.mubr.bf16.mxu0 0
        %2491 = vmatmul.mubr.bf16.gmra.mxu0 %v679
        %v2492 = vpop.f32.mrf.mxu0
        %v2493 = vadd.f32 0.0, %v2492
        %v2494 = vpop.f32.mrf.mxu0
        %v2495 = vpop.f32.mrf.mxu0
        %v2496 = vadd.f32 0.0, %v2495
        %v2497 = vpop.f32.mrf.mxu0
        %2498 = vdwg.mxu0
        %v2499 = vpack.c.bf16 %v2496, %v2493
        %v2532 = vunpack.c.l.b16 %v2423
        %v2533 = vunpack.c.l.b16 %v2424
        %v2534 = vunpack.c.l.b16 %v2425
        %v2535 = vunpack.c.l.b16 %v2426
        %v2536 = vunpack.c.l.b16 %v2427
        %v2537 = vunpack.c.l.b16 %v2428
        %v2538 = vunpack.c.l.b16 %v2429
        %v2539 = vunpack.c.l.b16 %v2430
        %v2540 = vunpack.c.l.b16 %v2431
        %v2541 = vunpack.c.l.b16 %v2432
        %v2542 = vunpack.c.l.b16 %v2433
        %v2543 = vunpack.c.l.b16 %v2434
        %v2544 = vunpack.c.l.b16 %v2435
        %v2545 = vunpack.c.l.b16 %v2436
        %v2546 = vunpack.c.l.b16 %v2437
        %v2547 = vunpack.c.l.b16 %v2438
        %v2548 = vunpack.c.l.b16 %v2439
        %v2549 = vunpack.c.l.b16 %v2440
        %v2550 = vunpack.c.l.b16 %v2441
        %v2551 = vunpack.c.l.b16 %v2442
        %v2552 = vunpack.c.l.b16 %v2443
        %v2553 = vunpack.c.l.b16 %v2444
        %v2554 = vunpack.c.l.b16 %v2445
        %v2555 = vunpack.c.l.b16 %v2446
        %v2556 = vunpack.c.l.b16 %v2447
        %v2557 = vunpack.c.l.b16 %v2448
        %v2558 = vunpack.c.l.b16 %v2449
        %v2559 = vunpack.c.l.b16 %v2450
        %v2560 = vunpack.c.l.b16 %v2451
        %v2561 = vunpack.c.l.b16 %v2452
        %v2562 = vunpack.c.l.b16 %v2453
        %v2563 = vunpack.c.l.b16 %v2454
        %v2564 = vpack.c.b16 %v2533, %v2532
        %v2565 = vpack.c.b16 %v2535, %v2534
        %v2566 = vpack.c.b16 %v2537, %v2536
        %v2567 = vpack.c.b16 %v2539, %v2538
        %v2568 = vpack.c.b16 %v2541, %v2540
        %v2569 = vpack.c.b16 %v2543, %v2542
        %v2570 = vpack.c.b16 %v2545, %v2544
        %v2571 = vpack.c.b16 %v2547, %v2546
        %v2572 = vpack.c.b16 %v2549, %v2548
        %v2573 = vpack.c.b16 %v2551, %v2550
        %v2574 = vpack.c.b16 %v2553, %v2552
        %v2575 = vpack.c.b16 %v2555, %v2554
        %v2576 = vpack.c.b16 %v2557, %v2556
        %v2577 = vpack.c.b16 %v2559, %v2558
        %v2578 = vpack.c.b16 %v2561, %v2560
        %v2579 = vpack.c.b16 %v2563, %v2562
        %2596 = vmatprep.subr.bf16.mxu0 0
        %2597 = vmatpush1.bf16.msra.mxu0 %v2571
        %2598 = vmatprep.subr.bf16.mxu0 0
        %2599 = vmatpush1.bf16.msra.mxu0 %v2570
        %2600 = vmatprep.subr.bf16.mxu0 0
        %2601 = vmatpush1.bf16.msra.mxu0 %v2569
        %2602 = vmatprep.subr.bf16.mxu0 0
        %2603 = vmatpush1.bf16.msra.mxu0 %v2568
        %2604 = vmatprep.subr.bf16.mxu0 0
        %2605 = vmatpush1.bf16.msra.mxu0 %v2567
        %2606 = vmatprep.subr.bf16.mxu0 0
        %2607 = vmatpush1.bf16.msra.mxu0 %v2566
        %2608 = vmatprep.subr.bf16.mxu0 0
        %2609 = vmatpush1.bf16.msra.mxu0 %v2565
        %2610 = vmatprep.subr.bf16.mxu0 0
        %2611 = vmatpush1.bf16.msra.mxu0 %v2564
        %2612 = vmatprep.subr.bf16.mxu0 0
        %2613 = vmatpush2.bf16.msra.mxu0 %v2579
        %2614 = vmatprep.subr.bf16.mxu0 0
        %2615 = vmatpush2.bf16.msra.mxu0 %v2578
        %2616 = vmatprep.subr.bf16.mxu0 0
        %2617 = vmatpush2.bf16.msra.mxu0 %v2577
        %2618 = vmatprep.subr.bf16.mxu0 0
        %2619 = vmatpush2.bf16.msra.mxu0 %v2576
        %2620 = vmatprep.subr.bf16.mxu0 0
        %2621 = vmatpush2.bf16.msra.mxu0 %v2575
        %2622 = vmatprep.subr.bf16.mxu0 0
        %2623 = vmatpush2.bf16.msra.mxu0 %v2574
        %2624 = vmatprep.subr.bf16.mxu0 0
        %2625 = vmatpush2.bf16.msra.mxu0 %v2573
        %2626 = vmatprep.subr.bf16.mxu0 0
        %2627 = vmatpush2.bf16.msra.mxu0 %v2572
        %2628 = vmatprep.mubr.bf16.mxu0 %v2457
        %2629 = vmatmul.mubr.bf16.gmra.mxu0 %v2499
        %v2630 = vpop.f32.mrf.mxu0
        %v2631 = vadd.f32 0.0, %v2630
        %v2632 = vpop.f32.mrf.mxu0
        %v2633 = vpop.f32.mrf.mxu0
        %v2634 = vadd.f32 0.0, %v2633
        %v2635 = vpop.f32.mrf.mxu0
        %2636 = vdwg.mxu0
        %vm2637 = vcmask 523264
        %v2638 = vsel %vm2637, %v2631, 0.0
        %v2639 = vsel %vm2637, %v2634, 0.0
        %v2640 = vadd.f32 %v2638, %v2639
        %v2641 = vrot.slane %v2640, 4
        %v2642 = vadd.f32 %v2640, %v2641
        %v2643 = vrot.slane %v2642, 2
        %v2644 = vadd.f32 %v2642, %v2643
        %v2645 = vrot.slane %v2644, 1
        %v2646 = vadd.f32 %v2644, %v2645
        %v2647 = vmul.f32 %v2646, %v1885
        %v2648 = vmul.f32 %v2631, %v2631
        %v2649 = vmul.f32 %v2634, %v2634
        %v2650 = vsel %vm2637, %v2648, 0.0
        %v2651 = vsel %vm2637, %v2649, 0.0
        %v2652 = vadd.f32 %v2650, %v2651
        %v2653 = vrot.slane %v2652, 4
        %v2654 = vadd.f32 %v2652, %v2653
        %v2655 = vrot.slane %v2654, 2
        %v2656 = vadd.f32 %v2654, %v2655
        %v2657 = vrot.slane %v2656, 1
        %v2658 = vadd.f32 %v2656, %v2657
        %v2659 = vmul.f32 %v2658, %v1885
        %v2660 = vmul.f32 %v2647, %v2647
        %v2661 = vsub.f32 %v2659, %v2660
        %v2662 = vmax.f32 %v2661, 0.0
        %v2663 = vadd.f32 %v2662, 1e-05
        %v2664 = vrsqrt.pop %v2663
        %v2665 = vmul.f32 %v2455, %v2664
        %v2666 = vmul.f32 %v2647, %v2665
        %v2667 = vsub.f32 %v2456, %v2666
        %v2669 = vlaneseq
        %v2670 = vshrl.u32 %v2669, 7
        %v2671 = vsub.s32 0, %v2670
        %v2672 = vrot.slane %v2665, %v2671
        %v2674 = vmul.f32 %v2631, %v2672
        %v2675 = vmul.f32 %v2634, %v2672
        %v2677 = vlaneseq
        %v2678 = vshrl.u32 %v2677, 7
        %v2679 = vsub.s32 0, %v2678
        %v2680 = vrot.slane %v2667, %v2679
        %v2682 = vadd.f32 %v2674, %v2680
        %v2683 = vadd.f32 %v2675, %v2680
        %v2684 = vmax.f32 %v2682, 0.0
        %v2685 = vmax.f32 %v2683, 0.0
        %v2686 = vld [vmem:[%s14] sm:$0x1]
        %v2687 = vld [vmem:[#allocation2] sm:$0x1]
        %2689 = vset.pattern.permute.xlu0 0
        %2690 = vperm.xlu0 %2689, %v2687
        %v2691 = vpop.permute.xlu0 %2690
        %v2693 = vlaneseq
        %v2694 = vshrl.u32 %v2693, 7
        %v2695 = vsub.s32 0, %v2694
        %v2696 = vrot.slane %v2691, %v2695
        %v2698 = vsel %vm2637, %v2686, 0
        %v2701 = vsel %vm2637, %v2684, 0
        %v2704 = vsel %vm2637, %v2685, 0
        %2706 = vmatprep.subr.mxu0 0.0
        %2707 = vmatpush1.xpose.msra.mxu0 0.0
        %2708 = vmatprep.subr.mxu0 0.0
        %2709 = vmatpush1.xpose.msra.mxu0 0.0
        %2710 = vmatprep.subr.mxu0 0.0
        %2711 = vmatpush1.xpose.msra.mxu0 0.0
        %2712 = vmatprep.subr.mxu0 0.0
        %2713 = vmatpush1.xpose.msra.mxu0 0.0
        %2714 = vmatprep.subr.mxu0 0.0
        %2715 = vmatpush1.xpose.msra.mxu0 0.0
        %2716 = vmatprep.subr.mxu0 0.0
        %2717 = vmatpush1.xpose.msra.mxu0 0.0
        %2718 = vmatprep.subr.mxu0 0.0
        %2719 = vmatpush1.xpose.msra.mxu0 0.0
        %2720 = vmatprep.subr.mxu0 0.0
        %2721 = vmatpush1.xpose.msra.mxu0 0.0
        %2722 = vmatprep.subr.mxu0 0.0
        %2723 = vmatpush1.xpose.msra.mxu0 0.0
        %2724 = vmatprep.subr.mxu0 0.0
        %2725 = vmatpush1.xpose.msra.mxu0 0.0
        %2726 = vmatprep.subr.mxu0 0.0
        %2727 = vmatpush1.xpose.msra.mxu0 0.0
        %2728 = vmatprep.subr.mxu0 0.0
        %2729 = vmatpush1.xpose.msra.mxu0 0.0
        %2730 = vmatprep.subr.mxu0 0.0
        %2731 = vmatpush1.xpose.msra.mxu0 0.0
        %2732 = vmatprep.subr.mxu0 0.0
        %2733 = vmatpush1.xpose.msra.mxu0 0.0
        %2734 = vmatprep.subr.mxu0 0.0
        %2735 = vmatpush1.xpose.msra.mxu0 %v2704
        %2736 = vmatprep.subr.mxu0 0.0
        %2737 = vmatpush1.xpose.msra.mxu0 %v2701
        %2738 = vmatprep.subr.mxu0 0.0
        %2739 = vmatpush2.xpose.msra.mxu0 0.0
        %2740 = vmatprep.subr.mxu0 0.0
        %2741 = vmatpush2.xpose.msra.mxu0 0.0
        %2742 = vmatprep.subr.mxu0 0.0
        %2743 = vmatpush2.xpose.msra.mxu0 0.0
        %2744 = vmatprep.subr.mxu0 0.0
        %2745 = vmatpush2.xpose.msra.mxu0 0.0
        %2746 = vmatprep.subr.mxu0 0.0
        %2747 = vmatpush2.xpose.msra.mxu0 0.0
        %2748 = vmatprep.subr.mxu0 0.0
        %2749 = vmatpush2.xpose.msra.mxu0 0.0
        %2750 = vmatprep.subr.mxu0 0.0
        %2751 = vmatpush2.xpose.msra.mxu0 0.0
        %2752 = vmatprep.subr.mxu0 0.0
        %2753 = vmatpush2.xpose.msra.mxu0 0.0
        %2754 = vmatprep.subr.mxu0 0.0
        %2755 = vmatpush2.xpose.msra.mxu0 0.0
        %2756 = vmatprep.subr.mxu0 0.0
        %2757 = vmatpush2.xpose.msra.mxu0 0.0
        %2758 = vmatprep.subr.mxu0 0.0
        %2759 = vmatpush2.xpose.msra.mxu0 0.0
        %2760 = vmatprep.subr.mxu0 0.0
        %2761 = vmatpush2.xpose.msra.mxu0 0.0
        %2762 = vmatprep.subr.mxu0 0.0
        %2763 = vmatpush2.xpose.msra.mxu0 0.0
        %2764 = vmatprep.subr.mxu0 0.0
        %2765 = vmatpush2.xpose.msra.mxu0 0.0
        %2766 = vmatprep.subr.mxu0 0.0
        %2767 = vmatpush2.xpose.msra.mxu0 0.0
        %2768 = vmatprep.subr.mxu0 0.0
        %2769 = vmatpush2.xpose.msra.mxu0 0.0
        %2770 = vmatprep.mubr.f32.mxu0 0.0
        %2771 = vmatmul.mubr.f32.gmra.mxu0 %v2698
        %v2772 = vpop.f32.mrf.mxu0
        %v2773 = vadd.f32 %v2696, %v2772
        %v2774 = vpop.f32.mrf.mxu0
        %2775 = vdwg.mxu0
        %v2776 = vmin.f32 %v2773, 0.0
        %v2777 = vand.u32 2147483647, %v2773
        %v2778 = vsub.f32 0.0, %v2777
        %v2779 = vmul.f32 %v2778, 1.442695
        %v2780 = vpow.pop %v2779
        %v2781 = vadd.f32 %v2780, 1.0
        %v2782 = vlog2.pop %v2781
        %v2783 = vmul.f32 %v2782, 0.6931472
        %v2784 = vmul.f32 -0.5, %v2780
        %v2785 = vadd.f32 %v2784, 1.0
        %v2786 = vmul.f32 %v2785, %v2780
        %v2787 = vand.u32 2147483647, %v2780
        %vm2788 = vcmp.lt.f32.partialorder %v2787, 0.0004427343
        %v2789 = vsel %vm2788, %v2786, %v2783
        %v2790 = vsub.f32 %v2776, %v2789
        %vm2791 = vcmask 122880
        %v2792 = vsel %vm2791, %v2790, -inf
        %2793 = vmax.xlane.f32.xlu0 %v2792
        %v2794 = vpop.xlane.xlu0 %2793
        %v2795 = vsub.f32 %v2790, %v2794
        %v2796 = vmul.f32 %v2795, 1.442695
        %v2797 = vpow.pop %v2796
        %v2798 = vsel %vm2791, %v2797, 0.0
        %2799 = vadd.xlane.f32.xlu0 %v2798
        %v2800 = vpop.xlane.xlu0 %2799
        %v2801 = vlog2.pop %v2800
        %v2802 = vmul.f32 %v2801, 0.6931472
        %v2803 = vadd.f32 %v2794, %v2802
        %v2804 = vsub.f32 %v2790, %v2803
        %2805 = vst.msk [vmem:[%s548] sm:$0x1] %vm2791, %v2804
        %s2806 = sand.u32 %s396, 1
        %s2807 = scalar_lea.sflag [#allocation4], %s2806
        %s2808 = sand.u32 %s396, 1
        %s2809 = scalar_lea.vmem [#allocation3], %s2808
        // Predicated region
        $region85: #{gnn_sample_forward_batched.1} parent=83 // pred_check
          %p2810 = pneg %p406
        $region86: #{gnn_sample_forward_batched.1} parent=83 // pred_check_branch
          %2812 = sbr.rel (%p2810) target = $region88
        $region87: #{gnn_sample_forward_batched.1} parent=83 // pred_region
          %s2814 = ssub.s32 16, 16
          %2815 = vsyncadd %s2807, %s2814
          %s2816 = smul.addr %s32, 16
          %s2817 = scalar_lea.hbm %s16, %s2816
          %s2819 = sshll.u32 %s2809, 4
          %s2820 = int_to_ptr.vmem [resolvable:$true] %s2819
          %2822 = dma.vmem_to_hbm [thread:$0]  %s2820, 16, %s2817, %s2807
        $region88: #{gnn_sample_forward_batched.1} parent=83 // pred_fallthru
          _
      $region84: #{gnn_sample_forward_batched.1} parent=5 // pred_fallthru
        _
      %p2823 = scmp.le.s32.totalorder 2, %s27
      // Predicated region
      $region89: #{gnn_sample_forward_batched.1} parent=5 // pred_check
        %p2824 = pneg %p2823
      $region90: #{gnn_sample_forward_batched.1} parent=5 // pred_check_branch
        %2826 = sbr.rel (%p2824) target = $region92
      $region91: #{gnn_sample_forward_batched.1} parent=5 // pred_region
        %s2827 = ssub.s32 %s27, 2
        // Predicated region
        $region93: #{gnn_sample_forward_batched.1} parent=91 // pred_check
          %p2828 = pneg %p412
        $region94: #{gnn_sample_forward_batched.1} parent=91 // pred_check_branch
          %2830 = sbr.rel (%p2828) target = $region96
        $region95: #{gnn_sample_forward_batched.1} parent=91 // pred_region
          %s2831 = sand.u32 %s397, 1
          %s2832 = scalar_lea.sflag [#allocation4], %s2831
          %s2833 = sand.u32 %s397, 1
          %s2834 = scalar_lea.vmem [#allocation3], %s2833
          %2835 = dma.done %s2832, 16
        $region96: #{gnn_sample_forward_batched.1} parent=91 // pred_fallthru
          _
      $region92: #{gnn_sample_forward_batched.1} parent=5 // pred_fallthru
        _
    $region6: #{gnn_sample_forward_batched.1} parent=1 // loop_footer
      %s31 = sadd.s32 1, %s27
    $region7: #{gnn_sample_forward_batched.1} parent=1 // loop_footer_branch
      %26 = sbr.rel target = $region3
    $region8: #{gnn_sample_forward_batched.1} parent=1 // loop_exit
      _
    %2836 = vsyncpa [#allocation4], 1
    %s2837 = scalar_lea.sflag [#allocation4], 1
    %2838 = vsyncpa %s2837, 1

</llo_original>
